<compile_context>
chip_gen: v7x
topology: tpu7x:2x2x1
jax: 0.10.0
libtpu: 0.0.40
codegen_flags: <defaults>
</compile_context>

<pallas_src>
import functools

import jax
import jax.numpy as jnp
import numpy as np
from jax.experimental import pallas as pl
from jax.experimental.pallas import tpu as pltpu

P_HIGH = jax.lax.Precision.HIGHEST


# ---------------------------------------------------------------------------
# Fused kernel: conv1 -> conv2 -> conv3 -> global avg pool -> linear -> L2 norm
# (one batch tile of Bt examples per grid step)
# ---------------------------------------------------------------------------
def _fused_cnn1d_kernel(x_ref, avg_ref, w1_ref, t1_ref, w2_ref, t2_ref,
                        w3_ref, t3_ref, wf_ref, tf_ref, o_ref,
                        p1_ref, p2_ref, p3_ref, *, L):
    # x_ref : (Bt*L, Cin) activations, length on sublanes / channels on lanes.
    # w*_ref: (3*Cin, Cout) conv weights with BN(eval) folded (bf16 or f32).
    # t*_ref: (1, Cout) folded conv-bias + BN shift (f32).
    # wf_ref: (2H, F) feature-layer weight (BN folded); tf_ref: (1, F).
    # avg_ref: (Bt, Bt*l3) host-precomputed per-example averaging matrix (f32).
    # o_ref : (Bt, F) L2-normalized features.
    # p*_ref: f32 VMEM scratch holding each MaxPool stage's pairwise-max.

    def conv_block(h, w_ref, t_ref, pool_ref, l_in):
        # Conv1d(k=3, pad=1) + folded BN + ReLU + MaxPool1d(2) on (rows, Cin),
        # rows = Bt * l_in, rows ordered batch-major / length-minor.
        assert l_in % 2 == 0, "MaxPool1d(2) stage needs an even length"
        rows, _ = h.shape
        pos = jax.lax.broadcasted_iota(jnp.int32, h.shape, 0) % l_in
        # +-1 shifted copies via sublane rolls (XLU); rows that would read
        # across an example boundary are zeroed — this is also the zero
        # padding of padding=1.
        h_prev = jnp.where(pos == 0, 0.0, pltpu.roll(h, 1, axis=0))
        h_next = jnp.where(pos == l_in - 1, 0.0, pltpu.roll(h, rows - 1, axis=0))
        im2col = jnp.concatenate([h_prev, h, h_next], axis=-1)        # (rows, 3*Cin), f32
        y = jnp.dot(im2col.astype(w_ref.dtype), w_ref[...],           # MXU (bf16 in,
                    preferred_element_type=jnp.float32)               #  f32 accumulate)
        y = jnp.maximum(y + t_ref[...], 0.0)                          # folded bias+BN; ReLU (VPU, f32)
        # MaxPool1d(2): pair[r] = max(y[r], y[r+1]).  The roll wraps the last
        # row of the tile onto row 0, but since l_in is even only EVEN rows are
        # read back below, so no pair ever mixes two examples.  Do not change
        # the selection stride without revisiting this.
        pair = jnp.maximum(y, pltpu.roll(y, rows - 1, axis=0))
        pool_ref[...] = pair
        # Decimation = strided sublane read from VMEM scratch (replaces the
        # old O(rows^2) 0/1 selection matmul).
        return pool_ref[pl.ds(0, rows // 2, stride=2), :]

    h = x_ref[...].astype(jnp.float32)                    # (Bt*L,   Cin)
    h = conv_block(h, w1_ref, t1_ref, p1_ref, L)          # (Bt*L/2, H)
    h = conv_block(h, w2_ref, t2_ref, p2_ref, L // 2)     # (Bt*L/4, H)
    h = conv_block(h, w3_ref, t3_ref, p3_ref, L // 4)     # (Bt*L/8, 2H)

    # AdaptiveAvgPool1d(1): per-example mean over the remaining length via a
    # tiny precomputed averaging matmul (kept f32; K = Bt*l3 is small).
    pooled = jnp.dot(avg_ref[...], h, preferred_element_type=jnp.float32)   # (Bt, 2H)

    # Feature layer: Linear + folded BN + ReLU, then F.normalize(p=2, dim=1).
    y = jnp.dot(pooled.astype(wf_ref.dtype), wf_ref[...],
                preferred_element_type=jnp.float32)
    y = jnp.maximum(y + tf_ref[...], 0.0)
    ss = jnp.sum(y * y, axis=1, keepdims=True)
    y = y * jax.lax.rsqrt(jnp.maximum(ss, 1e-24))          # == y / max(||y||, 1e-12)
    o_ref[...] = y.astype(o_ref.dtype)


# ---------------------------------------------------------------------------
# Host-side parameter folding (one-time, eval mode)
# ---------------------------------------------------------------------------
def fold_bn(gamma, beta, mean, var, eps=1e-5):
    scale = gamma / jnp.sqrt(var + eps)
    shift = beta - mean * scale
    return scale, shift


def fold_conv(w, b, scale, shift, dtype):
    """(3, Cin, Cout) conv + bias + BN(eval) -> ((3*Cin, Cout) dtype, (1, Cout) f32)."""
    w_f = (w * scale).reshape(-1, w.shape[-1]).astype(dtype)
    t = (b * scale + shift).reshape(1, -1).astype(jnp.float32)
    return w_f, t


def fold_linear(w, b, scale, shift, dtype):
    return (w * scale).astype(dtype), (b * scale + shift).reshape(1, -1).astype(jnp.float32)


def prepare_params(p, matmul_dtype=jnp.bfloat16):
    """Fold conv/linear bias + BN(eval) stats; cast matmul weights to matmul_dtype.

    bf16 weights feed the MXU at full rate on v5e/v6e/v7x and halve weight/im2col
    VMEM; the additive terms stay f32 and are applied on the VPU.
    """
    fp = {}
    fp["w1"], fp["t1"] = fold_conv(p["w1"], p["b1"], p["s1"], p["t1"], matmul_dtype)
    fp["w2"], fp["t2"] = fold_conv(p["w2"], p["b2"], p["s2"], p["t2"], matmul_dtype)
    fp["w3"], fp["t3"] = fold_conv(p["w3"], p["b3"], p["s3"], p["t3"], matmul_dtype)
    fp["wf"], fp["tf"] = fold_linear(p["wf"], p["bf"], p["sf"], p["tf"], matmul_dtype)
    return fp


def init_params(key, in_channels, hidden_dim, feature_dim):
    ks = jax.random.split(key, 12)
    p = {}

    def bn(k, c):
        k1, k2, k3, k4 = jax.random.split(k, 4)
        gamma = jax.random.uniform(k1, (c,), jnp.float32, 0.8, 1.2)
        beta = 0.1 * jax.random.normal(k2, (c,), jnp.float32)
        mean = 0.1 * jax.random.normal(k3, (c,), jnp.float32)
        var = jax.random.uniform(k4, (c,), jnp.float32, 0.5, 1.5)
        return fold_bn(gamma, beta, mean, var)

    # conv weights in (k, Cin, Cout) layout
    p["w1"] = 0.2 * jax.random.normal(ks[0], (3, in_channels, hidden_dim), jnp.float32)
    p["b1"] = 0.05 * jax.random.normal(ks[1], (hidden_dim,), jnp.float32)
    p["s1"], p["t1"] = bn(ks[2], hidden_dim)

    p["w2"] = 0.2 * jax.random.normal(ks[3], (3, hidden_dim, hidden_dim), jnp.float32)
    p["b2"] = 0.05 * jax.random.normal(ks[4], (hidden_dim,), jnp.float32)
    p["s2"], p["t2"] = bn(ks[5], hidden_dim)

    p["w3"] = 0.2 * jax.random.normal(ks[6], (3, hidden_dim, 2 * hidden_dim), jnp.float32)
    p["b3"] = 0.05 * jax.random.normal(ks[7], (2 * hidden_dim,), jnp.float32)
    p["s3"], p["t3"] = bn(ks[8], 2 * hidden_dim)

    p["wf"] = 0.2 * jax.random.normal(ks[9], (2 * hidden_dim, feature_dim), jnp.float32)
    p["bf"] = 0.05 * jax.random.normal(ks[10], (feature_dim,), jnp.float32)
    p["sf"], p["tf"] = bn(ks[11], feature_dim)
    return p


# ---------------------------------------------------------------------------
# Wrapper: batch-tiled pallas_call
# ---------------------------------------------------------------------------
def cnn1d_attention_forward(x, fp, *, batch_tile=8, channels_last=False):
    """Forward pass.  x: (B, C, L) like the PyTorch module, or (B, L, C) if
    channels_last=True.  fp: folded params from prepare_params().

    Production callers should pass channels_last=True data so the layout change
    does not cost an extra HBM read+write before the kernel.  batch_tile bounds
    the per-grid-step VMEM footprint; re-derive it for v7x (64 MiB VMEM, 2 TCs)
    separately from v5e/v6e (128 MiB).
    """
    if channels_last:
        B, L, c_in = x.shape
        x2d = x.reshape(B * L, c_in)                       # free reshape, no transpose
    else:
        B, c_in, L = x.shape
        # TODO(synk): extra HBM pass for the PyTorch (B, C, L) layout; feed
        # channels-last upstream at production sizes.
        x2d = jnp.transpose(x, (0, 2, 1)).reshape(B * L, c_in)
    assert L % 8 == 0, "three MaxPool1d(2) stages require L to be a multiple of 8"
    bt = min(batch_tile, B)
    assert B % bt == 0 and (bt % 8 == 0 or bt == B), \
        "batch tile must divide B and be sublane-friendly"

    hidden = fp["t1"].shape[-1]
    hid2 = fp["t3"].shape[-1]
    feat = fp["tf"].shape[-1]
    l3 = L // 8

    # Host-precomputed (bt, bt*l3) averaging matrix for AdaptiveAvgPool1d(1).
    avg = jnp.asarray(np.kron(np.eye(bt, dtype=np.float32),
                              np.full((1, l3), 1.0 / l3, dtype=np.float32)))

    def const_spec(arr):
        return pl.BlockSpec(arr.shape, lambda i: (0, 0))

    in_specs = [
        pl.BlockSpec((bt * L, c_in), lambda i: (i, 0)),    # x tile (double-buffered)
        const_spec(avg),
        const_spec(fp["w1"]), const_spec(fp["t1"]),
        const_spec(fp["w2"]), const_spec(fp["t2"]),
        const_spec(fp["w3"]), const_spec(fp["t3"]),
        const_spec(fp["wf"]), const_spec(fp["tf"]),
    ]
    out_spec = pl.BlockSpec((bt, feat), lambda i: (i, 0))

    scratch = [
        pltpu.VMEM((bt * L, hidden), jnp.float32),         # pool scratch, conv1
        pltpu.VMEM((bt * L // 2, hidden), jnp.float32),    # pool scratch, conv2
        pltpu.VMEM((bt * L // 4, hid2), jnp.float32),      # pool scratch, conv3
    ]

    return pl.pallas_call(
        functools.partial(_fused_cnn1d_kernel, L=L),
        out_shape=jax.ShapeDtypeStruct((B, feat), jnp.float32),
        grid_spec=pltpu.PrefetchScalarGridSpec(
            num_scalar_prefetch=0,
            grid=(B // bt,),
            in_specs=in_specs,
            out_specs=out_spec,
            scratch_shapes=scratch),
        compiler_params=pltpu.CompilerParams(
            # Batch axis shards across TensorCores; raise vmem_limit_bytes /
            # add pipeline_mode=pl.Buffered(3) on the x spec only if profiling
            # shows exposed DMA at production batch tiles (v5e).
            dimension_semantics=("parallel",)),
    )(x2d, avg, fp["w1"], fp["t1"], fp["w2"], fp["t2"], fp["w3"], fp["t3"],
      fp["wf"], fp["tf"])


# ---------------------------------------------------------------------------
# Pure-JAX reference (unfolded params, same eval-mode math)
# ---------------------------------------------------------------------------
def ref_conv_block(x, w, b, scale, shift):
    B, L, _ = x.shape
    xp = jnp.pad(x, ((0, 0), (1, 1), (0, 0)))
    y = (jnp.einsum("blc,co->blo", xp[:, 0:L], w[0], precision=P_HIGH)
         + jnp.einsum("blc,co->blo", xp[:, 1:L + 1], w[1], precision=P_HIGH)
         + jnp.einsum("blc,co->blo", xp[:, 2:L + 2], w[2], precision=P_HIGH))
    y = (y + b) * scale + shift
    y = jnp.maximum(y, 0.0)
    return jnp.max(y.reshape(B, L // 2, 2, -1), axis=2)


def ref_forward(x_bcl, p):
    x = jnp.transpose(x_bcl, (0, 2, 1))
    h = ref_conv_block(x, p["w1"], p["b1"], p["s1"], p["t1"])
    h = ref_conv_block(h, p["w2"], p["b2"], p["s2"], p["t2"])
    h = ref_conv_block(h, p["w3"], p["b3"], p["s3"], p["t3"])
    pooled = jnp.mean(h, axis=1)
    y = jnp.dot(pooled, p["wf"], precision=P_HIGH) + p["bf"]
    y = y * p["sf"] + p["tf"]
    y = jnp.maximum(y, 0.0)
    n = jnp.sqrt(jnp.sum(y * y, axis=1, keepdims=True))
    return y / jnp.maximum(n, 1e-12)


if __name__ == "__main__":
    B, C_IN, L = 16, 4, 16
    HIDDEN, FEAT = 32, 32
    BATCH_TILE = 8                    # -> grid = (2,); 8 examples per grid step

    key = jax.random.PRNGKey(0)
    k_x, k_p = jax.random.split(key)
    x = jax.random.normal(k_x, (B, C_IN, L), jnp.float32)    # PyTorch (B, C, L) layout
    params = init_params(k_p, C_IN, HIDDEN, FEAT)
    ref = np.asarray(ref_forward(x, params))

    fwd = jax.jit(functools.partial(cnn1d_attention_forward, batch_tile=BATCH_TILE))

    # f32-matmul path: numerically faithful to the PyTorch eval-mode module.
    out_f32 = jax.block_until_ready(fwd(x, prepare_params(params, jnp.float32)))
    assert out_f32.shape == (B, FEAT)
    np.testing.assert_allclose(np.asarray(out_f32), ref, rtol=2e-4, atol=2e-5)

    # bf16-matmul / f32-accumulate path (the production configuration from the
    # perf review); only MXU inputs are rounded, so tolerance is bf16-scale.
    out_bf16 = jax.block_until_ready(fwd(x, prepare_params(params, jnp.bfloat16)))
    assert out_bf16.shape == (B, FEAT)
    np.testing.assert_allclose(np.asarray(out_bf16), ref, rtol=5e-2, atol=3e-2)

    print("KERNEL_OK")
</pallas_src>

<mosaic_0001>
module attributes {stable_mosaic.version = 11 : i64} {
  func.func @_fused_cnn1d_kernel(%arg0: i32, %arg1: memref<128x4xf32, #tpu.memory_space<vmem>>, %arg2: memref<8x16xf32, #tpu.memory_space<vmem>>, %arg3: memref<12x32xf32, #tpu.memory_space<vmem>>, %arg4: memref<1x32xf32, #tpu.memory_space<vmem>>, %arg5: memref<96x32xf32, #tpu.memory_space<vmem>>, %arg6: memref<1x32xf32, #tpu.memory_space<vmem>>, %arg7: memref<96x64xf32, #tpu.memory_space<vmem>>, %arg8: memref<1x64xf32, #tpu.memory_space<vmem>>, %arg9: memref<64x32xf32, #tpu.memory_space<vmem>>, %arg10: memref<1x32xf32, #tpu.memory_space<vmem>>, %arg11: memref<8x32xf32, #tpu.memory_space<vmem>>, %arg12: memref<128x32xf32, #tpu.memory_space<vmem>>, %arg13: memref<64x32xf32, #tpu.memory_space<vmem>>, %arg14: memref<32x64xf32, #tpu.memory_space<vmem>>) attributes {dimension_semantics = [#tpu.dimension_semantics<parallel>], iteration_bounds = array<i64: 2>, scalar_prefetch = 0 : i64, scratch_operands = 3 : i64, tpu.core_type = #tpu.core_type<tc>, window_params = [{transform_indices = @transform_0, window_bounds = array<i64: 128, 4>}, {pipeline_mode = #tpu.pipeline_mode<synchronous>, transform_indices = @transform_1, window_bounds = array<i64: 8, 16>}, {pipeline_mode = #tpu.pipeline_mode<synchronous>, transform_indices = @transform_2, window_bounds = array<i64: 12, 32>}, {pipeline_mode = #tpu.pipeline_mode<synchronous>, transform_indices = @transform_3, window_bounds = array<i64: 1, 32>}, {pipeline_mode = #tpu.pipeline_mode<synchronous>, transform_indices = @transform_4, window_bounds = array<i64: 96, 32>}, {pipeline_mode = #tpu.pipeline_mode<synchronous>, transform_indices = @transform_5, window_bounds = array<i64: 1, 32>}, {pipeline_mode = #tpu.pipeline_mode<synchronous>, transform_indices = @transform_6, window_bounds = array<i64: 96, 64>}, {pipeline_mode = #tpu.pipeline_mode<synchronous>, transform_indices = @transform_7, window_bounds = array<i64: 1, 64>}, {pipeline_mode = #tpu.pipeline_mode<synchronous>, transform_indices = @transform_8, window_bounds = array<i64: 64, 32>}, {pipeline_mode = #tpu.pipeline_mode<synchronous>, transform_indices = @transform_9, window_bounds = array<i64: 1, 32>}, {transform_indices = @transform_10, window_bounds = array<i64: 8, 32>}]} {
    %c0 = arith.constant 0 : index
    %c0_0 = arith.constant 0 : index
    %0 = vector.load %arg1[%c0, %c0_0] : memref<128x4xf32, #tpu.memory_space<vmem>>, vector<128x4xf32>
    %1 = tpu.iota {dimensions = array<i32: 0>} : vector<128x4xi32>
    %c16_i32 = arith.constant 16 : i32
    %c0_i32 = arith.constant 0 : i32
    %2 = arith.cmpi eq, %c16_i32, %c0_i32 : i32
    %c1_i32 = arith.constant 1 : i32
    %3 = arith.select %2, %c1_i32, %c16_i32 : i32
    %4 = vector.broadcast %3 : i32 to vector<128x4xi32>
    %5 = arith.remsi %1, %4 : vector<128x4xi32>
    %c0_i32_1 = arith.constant 0 : i32
    %6 = vector.broadcast %c0_i32_1 : i32 to vector<128x4xi32>
    %7 = arith.cmpi ne, %5, %6 : vector<128x4xi32>
    %c0_i32_2 = arith.constant 0 : i32
    %8 = vector.broadcast %c0_i32_2 : i32 to vector<128x4xi32>
    %9 = arith.cmpi slt, %5, %8 : vector<128x4xi32>
    %c0_i32_3 = arith.constant 0 : i32
    %10 = arith.cmpi slt, %3, %c0_i32_3 : i32
    %11 = vector.broadcast %10 : i1 to vector<128x4xi1>
    %12 = vector.broadcast %11 : vector<128x4xi1> to vector<128x4xi1>
    %13 = arith.xori %9, %12 : vector<128x4xi1>
    %14 = arith.andi %13, %7 : vector<128x4xi1>
    %15 = vector.broadcast %3 : i32 to vector<128x4xi32>
    %16 = arith.addi %5, %15 : vector<128x4xi32>
    %17 = arith.select %14, %16, %5 : vector<128x4xi1>, vector<128x4xi32>
    %c0_i32_4 = arith.constant 0 : i32
    %18 = vector.broadcast %c0_i32_4 : i32 to vector<128x4xi32>
    %19 = arith.cmpi eq, %17, %18 : vector<128x4xi32>
    %c1_i32_5 = arith.constant 1 : i32
    %20 = tpu.dynamic_rotate %0 by %c1_i32_5 dim 0 : vector<128x4xf32>, i32 -> vector<128x4xf32>
    %cst = arith.constant 0.000000e+00 : f32
    %21 = vector.broadcast %cst : f32 to vector<128x4xf32>
    %22 = arith.select %19, %21, %20 : vector<128x4xi1>, vector<128x4xf32>
    %c15_i32 = arith.constant 15 : i32
    %23 = vector.broadcast %c15_i32 : i32 to vector<128x4xi32>
    %24 = arith.cmpi eq, %17, %23 : vector<128x4xi32>
    %c127_i32 = arith.constant 127 : i32
    %25 = tpu.dynamic_rotate %0 by %c127_i32 dim 0 : vector<128x4xf32>, i32 -> vector<128x4xf32>
    %cst_6 = arith.constant 0.000000e+00 : f32
    %26 = vector.broadcast %cst_6 : f32 to vector<128x4xf32>
    %27 = arith.select %24, %26, %25 : vector<128x4xi1>, vector<128x4xf32>
    %28 = tpu.concatenate %22, %0, %27 in 1 : vector<128x4xf32>, vector<128x4xf32>, vector<128x4xf32> -> vector<128x12xf32>
    %c0_7 = arith.constant 0 : index
    %c0_8 = arith.constant 0 : index
    %29 = vector.load %arg3[%c0_7, %c0_8] : memref<12x32xf32, #tpu.memory_space<vmem>>, vector<12x32xf32>
    %cst_9 = arith.constant dense<0.000000e+00> : vector<128x32xf32>
    %30 = tpu.matmul %28, %29, %cst_9 {dimension_numbers = #tpu.dot_dimension_numbers<[1], [0], [0], [1], [0, 0, 1, 1], [], []>} : vector<128x12xf32>, vector<12x32xf32>, vector<128x32xf32> -> vector<128x32xf32>
    %c0_10 = arith.constant 0 : index
    %c0_11 = arith.constant 0 : index
    %31 = vector.load %arg4[%c0_10, %c0_11] : memref<1x32xf32, #tpu.memory_space<vmem>>, vector<1x32xf32>
    %32 = vector.broadcast %31 : vector<1x32xf32> to vector<128x32xf32>
    %33 = arith.addf %30, %32 : vector<128x32xf32>
    %cst_12 = arith.constant 0.000000e+00 : f32
    %34 = vector.broadcast %cst_12 : f32 to vector<128x32xf32>
    %35 = arith.maximumf %33, %34 : vector<128x32xf32>
    %c127_i32_13 = arith.constant 127 : i32
    %36 = tpu.dynamic_rotate %35 by %c127_i32_13 dim 0 : vector<128x32xf32>, i32 -> vector<128x32xf32>
    %37 = arith.maximumf %35, %36 : vector<128x32xf32>
    %c0_14 = arith.constant 0 : index
    %c0_15 = arith.constant 0 : index
    %38 = vector.load %arg12[%c0_14, %c0_15] : memref<128x32xf32, #tpu.memory_space<vmem>>, vector<128x32xf32>
    tpu.vector_store %arg12[%c0_14, %c0_15], %37 {strides = array<i32>} : memref<128x32xf32, #tpu.memory_space<vmem>>, vector<128x32xf32>,
    %c0_16 = arith.constant 0 : index
    %c0_17 = arith.constant 0 : index
    %39 = tpu.strided_load %arg12[%c0_16, %c0_17] {strides = array<i32: 2, 1>} : memref<128x32xf32, #tpu.memory_space<vmem>>, vector<64x32xf32>
    %40 = tpu.iota {dimensions = array<i32: 0>} : vector<64x32xi32>
    %c8_i32 = arith.constant 8 : i32
    %c0_i32_18 = arith.constant 0 : i32
    %41 = arith.cmpi eq, %c8_i32, %c0_i32_18 : i32
    %c1_i32_19 = arith.constant 1 : i32
    %42 = arith.select %41, %c1_i32_19, %c8_i32 : i32
    %43 = vector.broadcast %42 : i32 to vector<64x32xi32>
    %44 = arith.remsi %40, %43 : vector<64x32xi32>
    %c0_i32_20 = arith.constant 0 : i32
    %45 = vector.broadcast %c0_i32_20 : i32 to vector<64x32xi32>
    %46 = arith.cmpi ne, %44, %45 : vector<64x32xi32>
    %c0_i32_21 = arith.constant 0 : i32
    %47 = vector.broadcast %c0_i32_21 : i32 to vector<64x32xi32>
    %48 = arith.cmpi slt, %44, %47 : vector<64x32xi32>
    %c0_i32_22 = arith.constant 0 : i32
    %49 = arith.cmpi slt, %42, %c0_i32_22 : i32
    %50 = vector.broadcast %49 : i1 to vector<64x32xi1>
    %51 = vector.broadcast %50 : vector<64x32xi1> to vector<64x32xi1>
    %52 = arith.xori %48, %51 : vector<64x32xi1>
    %53 = arith.andi %52, %46 : vector<64x32xi1>
    %54 = vector.broadcast %42 : i32 to vector<64x32xi32>
    %55 = arith.addi %44, %54 : vector<64x32xi32>
    %56 = arith.select %53, %55, %44 : vector<64x32xi1>, vector<64x32xi32>
    %c0_i32_23 = arith.constant 0 : i32
    %57 = vector.broadcast %c0_i32_23 : i32 to vector<64x32xi32>
    %58 = arith.cmpi eq, %56, %57 : vector<64x32xi32>
    %c1_i32_24 = arith.constant 1 : i32
    %59 = tpu.dynamic_rotate %39 by %c1_i32_24 dim 0 : vector<64x32xf32>, i32 -> vector<64x32xf32>
    %cst_25 = arith.constant 0.000000e+00 : f32
    %60 = vector.broadcast %cst_25 : f32 to vector<64x32xf32>
    %61 = arith.select %58, %60, %59 : vector<64x32xi1>, vector<64x32xf32>
    %c7_i32 = arith.constant 7 : i32
    %62 = vector.broadcast %c7_i32 : i32 to vector<64x32xi32>
    %63 = arith.cmpi eq, %56, %62 : vector<64x32xi32>
    %c63_i32 = arith.constant 63 : i32
    %64 = tpu.dynamic_rotate %39 by %c63_i32 dim 0 : vector<64x32xf32>, i32 -> vector<64x32xf32>
    %cst_26 = arith.constant 0.000000e+00 : f32
    %65 = vector.broadcast %cst_26 : f32 to vector<64x32xf32>
    %66 = arith.select %63, %65, %64 : vector<64x32xi1>, vector<64x32xf32>
    %67 = tpu.concatenate %61, %39, %66 in 1 : vector<64x32xf32>, vector<64x32xf32>, vector<64x32xf32> -> vector<64x96xf32>
    %c0_27 = arith.constant 0 : index
    %c0_28 = arith.constant 0 : index
    %68 = vector.load %arg5[%c0_27, %c0_28] : memref<96x32xf32, #tpu.memory_space<vmem>>, vector<96x32xf32>
    %cst_29 = arith.constant dense<0.000000e+00> : vector<64x32xf32>
    %69 = tpu.matmul %67, %68, %cst_29 {dimension_numbers = #tpu.dot_dimension_numbers<[1], [0], [0], [1], [0, 0, 1, 1], [], []>} : vector<64x96xf32>, vector<96x32xf32>, vector<64x32xf32> -> vector<64x32xf32>
    %c0_30 = arith.constant 0 : index
    %c0_31 = arith.constant 0 : index
    %70 = vector.load %arg6[%c0_30, %c0_31] : memref<1x32xf32, #tpu.memory_space<vmem>>, vector<1x32xf32>
    %71 = vector.broadcast %70 : vector<1x32xf32> to vector<64x32xf32>
    %72 = arith.addf %69, %71 : vector<64x32xf32>
    %cst_32 = arith.constant 0.000000e+00 : f32
    %73 = vector.broadcast %cst_32 : f32 to vector<64x32xf32>
    %74 = arith.maximumf %72, %73 : vector<64x32xf32>
    %c63_i32_33 = arith.constant 63 : i32
    %75 = tpu.dynamic_rotate %74 by %c63_i32_33 dim 0 : vector<64x32xf32>, i32 -> vector<64x32xf32>
    %76 = arith.maximumf %74, %75 : vector<64x32xf32>
    %c0_34 = arith.constant 0 : index
    %c0_35 = arith.constant 0 : index
    %77 = vector.load %arg13[%c0_34, %c0_35] : memref<64x32xf32, #tpu.memory_space<vmem>>, vector<64x32xf32>
    tpu.vector_store %arg13[%c0_34, %c0_35], %76 {strides = array<i32>} : memref<64x32xf32, #tpu.memory_space<vmem>>, vector<64x32xf32>,
    %c0_36 = arith.constant 0 : index
    %c0_37 = arith.constant 0 : index
    %78 = tpu.strided_load %arg13[%c0_36, %c0_37] {strides = array<i32: 2, 1>} : memref<64x32xf32, #tpu.memory_space<vmem>>, vector<32x32xf32>
    %79 = tpu.iota {dimensions = array<i32: 0>} : vector<32x32xi32>
    %c4_i32 = arith.constant 4 : i32
    %c0_i32_38 = arith.constant 0 : i32
    %80 = arith.cmpi eq, %c4_i32, %c0_i32_38 : i32
    %c1_i32_39 = arith.constant 1 : i32
    %81 = arith.select %80, %c1_i32_39, %c4_i32 : i32
    %82 = vector.broadcast %81 : i32 to vector<32x32xi32>
    %83 = arith.remsi %79, %82 : vector<32x32xi32>
    %c0_i32_40 = arith.constant 0 : i32
    %84 = vector.broadcast %c0_i32_40 : i32 to vector<32x32xi32>
    %85 = arith.cmpi ne, %83, %84 : vector<32x32xi32>
    %c0_i32_41 = arith.constant 0 : i32
    %86 = vector.broadcast %c0_i32_41 : i32 to vector<32x32xi32>
    %87 = arith.cmpi slt, %83, %86 : vector<32x32xi32>
    %c0_i32_42 = arith.constant 0 : i32
    %88 = arith.cmpi slt, %81, %c0_i32_42 : i32
    %89 = vector.broadcast %88 : i1 to vector<32x32xi1>
    %90 = vector.broadcast %89 : vector<32x32xi1> to vector<32x32xi1>
    %91 = arith.xori %87, %90 : vector<32x32xi1>
    %92 = arith.andi %91, %85 : vector<32x32xi1>
    %93 = vector.broadcast %81 : i32 to vector<32x32xi32>
    %94 = arith.addi %83, %93 : vector<32x32xi32>
    %95 = arith.select %92, %94, %83 : vector<32x32xi1>, vector<32x32xi32>
    %c0_i32_43 = arith.constant 0 : i32
    %96 = vector.broadcast %c0_i32_43 : i32 to vector<32x32xi32>
    %97 = arith.cmpi eq, %95, %96 : vector<32x32xi32>
    %c1_i32_44 = arith.constant 1 : i32
    %98 = tpu.dynamic_rotate %78 by %c1_i32_44 dim 0 : vector<32x32xf32>, i32 -> vector<32x32xf32>
    %cst_45 = arith.constant 0.000000e+00 : f32
    %99 = vector.broadcast %cst_45 : f32 to vector<32x32xf32>
    %100 = arith.select %97, %99, %98 : vector<32x32xi1>, vector<32x32xf32>
    %c3_i32 = arith.constant 3 : i32
    %101 = vector.broadcast %c3_i32 : i32 to vector<32x32xi32>
    %102 = arith.cmpi eq, %95, %101 : vector<32x32xi32>
    %c31_i32 = arith.constant 31 : i32
    %103 = tpu.dynamic_rotate %78 by %c31_i32 dim 0 : vector<32x32xf32>, i32 -> vector<32x32xf32>
    %cst_46 = arith.constant 0.000000e+00 : f32
    %104 = vector.broadcast %cst_46 : f32 to vector<32x32xf32>
    %105 = arith.select %102, %104, %103 : vector<32x32xi1>, vector<32x32xf32>
    %106 = tpu.concatenate %100, %78, %105 in 1 : vector<32x32xf32>, vector<32x32xf32>, vector<32x32xf32> -> vector<32x96xf32>
    %c0_47 = arith.constant 0 : index
    %c0_48 = arith.constant 0 : index
    %107 = vector.load %arg7[%c0_47, %c0_48] : memref<96x64xf32, #tpu.memory_space<vmem>>, vector<96x64xf32>
    %cst_49 = arith.constant dense<0.000000e+00> : vector<32x64xf32>
    %108 = tpu.matmul %106, %107, %cst_49 {dimension_numbers = #tpu.dot_dimension_numbers<[1], [0], [0], [1], [0, 0, 1, 1], [], []>} : vector<32x96xf32>, vector<96x64xf32>, vector<32x64xf32> -> vector<32x64xf32>
    %c0_50 = arith.constant 0 : index
    %c0_51 = arith.constant 0 : index
    %109 = vector.load %arg8[%c0_50, %c0_51] : memref<1x64xf32, #tpu.memory_space<vmem>>, vector<1x64xf32>
    %110 = vector.broadcast %109 : vector<1x64xf32> to vector<32x64xf32>
    %111 = arith.addf %108, %110 : vector<32x64xf32>
    %cst_52 = arith.constant 0.000000e+00 : f32
    %112 = vector.broadcast %cst_52 : f32 to vector<32x64xf32>
    %113 = arith.maximumf %111, %112 : vector<32x64xf32>
    %c31_i32_53 = arith.constant 31 : i32
    %114 = tpu.dynamic_rotate %113 by %c31_i32_53 dim 0 : vector<32x64xf32>, i32 -> vector<32x64xf32>
    %115 = arith.maximumf %113, %114 : vector<32x64xf32>
    %c0_54 = arith.constant 0 : index
    %c0_55 = arith.constant 0 : index
    %116 = vector.load %arg14[%c0_54, %c0_55] : memref<32x64xf32, #tpu.memory_space<vmem>>, vector<32x64xf32>
    tpu.vector_store %arg14[%c0_54, %c0_55], %115 {strides = array<i32>} : memref<32x64xf32, #tpu.memory_space<vmem>>, vector<32x64xf32>,
    %c0_56 = arith.constant 0 : index
    %c0_57 = arith.constant 0 : index
    %117 = tpu.strided_load %arg14[%c0_56, %c0_57] {strides = array<i32: 2, 1>} : memref<32x64xf32, #tpu.memory_space<vmem>>, vector<16x64xf32>
    %c0_58 = arith.constant 0 : index
    %c0_59 = arith.constant 0 : index
    %118 = vector.load %arg2[%c0_58, %c0_59] : memref<8x16xf32, #tpu.memory_space<vmem>>, vector<8x16xf32>
    %cst_60 = arith.constant dense<0.000000e+00> : vector<8x64xf32>
    %119 = tpu.matmul %118, %117, %cst_60 {dimension_numbers = #tpu.dot_dimension_numbers<[1], [0], [0], [1], [0, 0, 1, 1], [], []>} : vector<8x16xf32>, vector<16x64xf32>, vector<8x64xf32> -> vector<8x64xf32>
    %c0_61 = arith.constant 0 : index
    %c0_62 = arith.constant 0 : index
    %120 = vector.load %arg9[%c0_61, %c0_62] : memref<64x32xf32, #tpu.memory_space<vmem>>, vector<64x32xf32>
    %cst_63 = arith.constant dense<0.000000e+00> : vector<8x32xf32>
    %121 = tpu.matmul %119, %120, %cst_63 {dimension_numbers = #tpu.dot_dimension_numbers<[1], [0], [0], [1], [0, 0, 1, 1], [], []>} : vector<8x64xf32>, vector<64x32xf32>, vector<8x32xf32> -> vector<8x32xf32>
    %c0_64 = arith.constant 0 : index
    %c0_65 = arith.constant 0 : index
    %122 = vector.load %arg10[%c0_64, %c0_65] : memref<1x32xf32, #tpu.memory_space<vmem>>, vector<1x32xf32>
    %123 = vector.broadcast %122 : vector<1x32xf32> to vector<8x32xf32>
    %124 = arith.addf %121, %123 : vector<8x32xf32>
    %cst_66 = arith.constant 0.000000e+00 : f32
    %125 = vector.broadcast %cst_66 : f32 to vector<8x32xf32>
    %126 = arith.maximumf %124, %125 : vector<8x32xf32>
    %127 = arith.mulf %126, %126 : vector<8x32xf32>
    %cst_67 = arith.constant dense<0.000000e+00> : vector<8xf32>
    %128 = vector.multi_reduction <add>, %127, %cst_67 [1] : vector<8x32xf32> to vector<8xf32>
    %129 = vector.shape_cast %128 : vector<8xf32> to vector<8x1xf32>
    %cst_68 = arith.constant 1.000000e-24 : f32
    %130 = vector.broadcast %cst_68 : f32 to vector<8x1xf32>
    %131 = arith.maximumf %129, %130 : vector<8x1xf32>
    %132 = math.rsqrt %131 : vector<8x1xf32>
    %133 = vector.broadcast %132 : vector<8x1xf32> to vector<8x32xf32>
    %134 = arith.mulf %126, %133 : vector<8x32xf32>
    %c0_69 = arith.constant 0 : index
    %c0_70 = arith.constant 0 : index
    %135 = vector.load %arg11[%c0_69, %c0_70] : memref<8x32xf32, #tpu.memory_space<vmem>>, vector<8x32xf32>
    tpu.vector_store %arg11[%c0_69, %c0_70], %134 {strides = array<i32>} : memref<8x32xf32, #tpu.memory_space<vmem>>, vector<8x32xf32>,
    return
  }
  func.func @transform_0(%arg0: i32) -> (i32, i32) {
    %c0_i32 = arith.constant 0 : i32
    %c0_i32_0 = arith.constant 0 : i32
    return %arg0, %c0_i32 : i32, i32
  }
  func.func @transform_1(%arg0: i32) -> (i32, i32) {
    %c0_i32 = arith.constant 0 : i32
    %c0_i32_0 = arith.constant 0 : i32
    %c0_i32_1 = arith.constant 0 : i32
    return %c0_i32, %c0_i32_0 : i32, i32
  }
  func.func @transform_2(%arg0: i32) -> (i32, i32) {
    %c0_i32 = arith.constant 0 : i32
    %c0_i32_0 = arith.constant 0 : i32
    %c0_i32_1 = arith.constant 0 : i32
    return %c0_i32, %c0_i32_0 : i32, i32
  }
  func.func @transform_3(%arg0: i32) -> (i32, i32) {
    %c0_i32 = arith.constant 0 : i32
    %c0_i32_0 = arith.constant 0 : i32
    %c0_i32_1 = arith.constant 0 : i32
    return %c0_i32, %c0_i32_0 : i32, i32
  }
  func.func @transform_4(%arg0: i32) -> (i32, i32) {
    %c0_i32 = arith.constant 0 : i32
    %c0_i32_0 = arith.constant 0 : i32
    %c0_i32_1 = arith.constant 0 : i32
    return %c0_i32, %c0_i32_0 : i32, i32
  }
  func.func @transform_5(%arg0: i32) -> (i32, i32) {
    %c0_i32 = arith.constant 0 : i32
    %c0_i32_0 = arith.constant 0 : i32
    %c0_i32_1 = arith.constant 0 : i32
    return %c0_i32, %c0_i32_0 : i32, i32
  }
  func.func @transform_6(%arg0: i32) -> (i32, i32) {
    %c0_i32 = arith.constant 0 : i32
    %c0_i32_0 = arith.constant 0 : i32
    %c0_i32_1 = arith.constant 0 : i32
    return %c0_i32, %c0_i32_0 : i32, i32
  }
  func.func @transform_7(%arg0: i32) -> (i32, i32) {
    %c0_i32 = arith.constant 0 : i32
    %c0_i32_0 = arith.constant 0 : i32
    %c0_i32_1 = arith.constant 0 : i32
    return %c0_i32, %c0_i32_0 : i32, i32
  }
  func.func @transform_8(%arg0: i32) -> (i32, i32) {
    %c0_i32 = arith.constant 0 : i32
    %c0_i32_0 = arith.constant 0 : i32
    %c0_i32_1 = arith.constant 0 : i32
    return %c0_i32, %c0_i32_0 : i32, i32
  }
  func.func @transform_9(%arg0: i32) -> (i32, i32) {
    %c0_i32 = arith.constant 0 : i32
    %c0_i32_0 = arith.constant 0 : i32
    %c0_i32_1 = arith.constant 0 : i32
    return %c0_i32, %c0_i32_0 : i32, i32
  }
  func.func @transform_10(%arg0: i32) -> (i32, i32) {
    %c0_i32 = arith.constant 0 : i32
    %c0_i32_0 = arith.constant 0 : i32
    return %arg0, %c0_i32 : i32, i32
  }
}

</mosaic_0001>

<llo_original>
// kernel: cnn1d_attention_forward.1
$region0: #{cnn1d_attention_forward.1}
  #allocation0 [shape = 'u32[]', space=smem, size = 0x4, offset = 0x4, fixed_abs, tag = 'smem constant byte address 0x4 - core index']
  #allocation1 [shape = 'u32[144,128]{1,0:T(1,128)}', space=vmem, size = 0x12000, scoped, tag = 'internal scratch']
  #allocation2 [shape = 'f32[128,32]{1,0:T(8,128)}', space=vmem, size = 0x10000, scoped, tag = 'scratch operand']
  #allocation3 [shape = 'f32[64,32]{1,0:T(8,128)}', space=vmem, size = 0x8000, scoped, tag = 'scratch operand']
  #allocation4 [shape = 'f32[32,64]{1,0:T(8,128)}', space=vmem, size = 0x4000, scoped, tag = 'scratch operand']
  %s0 = inlined_call_operand.vmem [shape: f32[256,4], index: 0, kind: input, shape index: {}]
  %s1 = inlined_call_operand.vmem [shape: f32[8,16], index: 1, kind: input, shape index: {}]
  %s2 = inlined_call_operand.vmem [shape: f32[12,32], index: 2, kind: input, shape index: {}]
  %s3 = inlined_call_operand.vmem [shape: f32[1,32], index: 3, kind: input, shape index: {}]
  %s4 = inlined_call_operand.vmem [shape: f32[96,32], index: 4, kind: input, shape index: {}]
  %s5 = inlined_call_operand.vmem [shape: f32[1,32], index: 5, kind: input, shape index: {}]
  %s6 = inlined_call_operand.vmem [shape: f32[96,64], index: 6, kind: input, shape index: {}]
  %s7 = inlined_call_operand.vmem [shape: f32[1,64], index: 7, kind: input, shape index: {}]
  %s8 = inlined_call_operand.vmem [shape: f32[64,32], index: 8, kind: input, shape index: {}]
  %s9 = inlined_call_operand.vmem [shape: f32[1,32], index: 9, kind: input, shape index: {}]
  %s10 = inlined_call_operand.hbm [shape: f32[16,32], index: 10, kind: output, shape index: {}]
  %s11 = sld [smem:[#allocation0]]
  $region73: #{cnn1d_attention_forward.1} parent=0
    _
  %s13 = ssub.s32 1, %s11
  %s14 = scalar_select 0, %s13, %s11
  $region1: #{cnn1d_attention_forward.1} parent=0
    #allocation5 [shape = 'u8[8192]{0}', space=vmem, size = 0x2000, scoped, tag = 'output window, operand 0']
    #allocation6 [shape = 's32[2]{0}', space=sflag, size = 0x8, scoped, tag = 'scoped memory for cnn1d_attention_forward.1']
    %15 = vsyncpa [#allocation6], 0
    %s16 = scalar_lea.sflag [#allocation6], 1
    %17 = vsyncpa %s16, 0
    loop: start=0, step=1, limit=4
    $region2: #{cnn1d_attention_forward.1} parent=1 // loop_pre_header
      _
    $region3: #{cnn1d_attention_forward.1} parent=1 // loop_header
      %s19 = sphi 0, %s23
      %p20 = scmp.ge.s32.totalorder %s19, 4
      %s29 = sphi 0, %s31
      %s32 = sphi 0, %s29
      %s33 = sphi 0, %s32
      %s49 = sphi 0, %s33
      %s53 = sphi 0, %s53
      %s55 = sphi 0, %s53
      %s56 = sphi 0, %s55
      %s70 = sphi 0, %s56
      %s74 = sphi 0, %s74
      %s76 = sphi 0, %s74
      %s77 = sphi 0, %s76
      %s91 = sphi 0, %s77
      %s95 = sphi 0, %s95
      %s97 = sphi 0, %s95
      %s98 = sphi 0, %s97
      %s112 = sphi 0, %s98
      %s116 = sphi 0, %s116
      %s118 = sphi 0, %s116
      %s119 = sphi 0, %s118
      %s133 = sphi 0, %s119
      %s137 = sphi 0, %s137
      %s139 = sphi 0, %s137
      %s140 = sphi 0, %s139
      %s154 = sphi 0, %s140
      %s158 = sphi 0, %s158
      %s160 = sphi 0, %s158
      %s161 = sphi 0, %s160
      %s175 = sphi 0, %s161
      %s179 = sphi 0, %s179
      %s181 = sphi 0, %s179
      %s182 = sphi 0, %s181
      %s196 = sphi 0, %s182
      %s200 = sphi 0, %s200
      %s202 = sphi 0, %s200
      %s203 = sphi 0, %s202
      %s217 = sphi 0, %s203
      %s221 = sphi 0, %s221
      %s223 = sphi 0, %s221
      %s224 = sphi 0, %s223
      %s238 = sphi 0, %s224
      %s244 = sphi 0, %s246
      %s247 = sphi 0, %s244
      %s248 = sphi 0, %s247
      %s264 = sphi 0, %s248
    $region4: #{cnn1d_attention_forward.1} parent=1 // loop_header_branch
      %22 = sbr.rel (%p20) target = $region8
    $region5: #{cnn1d_attention_forward.1} parent=1 // loop_body
      %s24 = ssub.s32 %s19, 1
      %s25 = ssub.s32 %s19, 2
      %s26 = sadd.s32 %s19, 1
      %s27 = ssub.s32 %s19, %s26
      %p28 = scmp.eq.s32.totalorder %s27, 0
      %s30 = sadd.s32 %s29, 1
      %s31 = scalar_select %p28, %s29, %s30
      %p34 = pneg %p28
      %p35 = scmp.eq.s32.totalorder %s19, 1
      %p36 = por %p34, %p35
      %p37 = scmp.ne.s32.totalorder %s29, %s32
      %p38 = scmp.eq.s32.totalorder %s19, 0
      %p39 = por %p37, %p38
      %p40 = scmp.ne.s32.totalorder %s29, %s32
      %p41 = scmp.eq.s32.totalorder %s24, 1
      %p42 = por %p40, %p41
      %p43 = scmp.ne.s32.totalorder %s32, %s33
      %p44 = scmp.eq.s32.totalorder %s24, 0
      %p45 = por %p43, %p44
      %p46 = scmp.ne.s32.totalorder %s32, %s33
      %p47 = scmp.eq.s32.totalorder %s25, 1
      %p48 = por %p46, %p47
      %p50 = scmp.ne.s32.totalorder %s33, %s49
      %p51 = scmp.eq.s32.totalorder %s25, 0
      %p52 = por %p50, %p51
      %s54 = sadd.s32 %s53, 1
      %p57 = scmp.eq.s32.totalorder %s19, 1
      %p58 = scmp.ne.s32.totalorder %s53, %s55
      %p59 = scmp.eq.s32.totalorder %s19, 0
      %p60 = por %p58, %p59
      %p61 = scmp.ne.s32.totalorder %s53, %s55
      %p62 = scmp.eq.s32.totalorder %s24, 1
      %p63 = por %p61, %p62
      %p64 = scmp.ne.s32.totalorder %s55, %s56
      %p65 = scmp.eq.s32.totalorder %s24, 0
      %p66 = por %p64, %p65
      %p67 = scmp.ne.s32.totalorder %s55, %s56
      %p68 = scmp.eq.s32.totalorder %s25, 1
      %p69 = por %p67, %p68
      %p71 = scmp.ne.s32.totalorder %s56, %s70
      %p72 = scmp.eq.s32.totalorder %s25, 0
      %p73 = por %p71, %p72
      %s75 = sadd.s32 %s74, 1
      %p78 = scmp.eq.s32.totalorder %s19, 1
      %p79 = scmp.ne.s32.totalorder %s74, %s76
      %p80 = scmp.eq.s32.totalorder %s19, 0
      %p81 = por %p79, %p80
      %p82 = scmp.ne.s32.totalorder %s74, %s76
      %p83 = scmp.eq.s32.totalorder %s24, 1
      %p84 = por %p82, %p83
      %p85 = scmp.ne.s32.totalorder %s76, %s77
      %p86 = scmp.eq.s32.totalorder %s24, 0
      %p87 = por %p85, %p86
      %p88 = scmp.ne.s32.totalorder %s76, %s77
      %p89 = scmp.eq.s32.totalorder %s25, 1
      %p90 = por %p88, %p89
      %p92 = scmp.ne.s32.totalorder %s77, %s91
      %p93 = scmp.eq.s32.totalorder %s25, 0
      %p94 = por %p92, %p93
      %s96 = sadd.s32 %s95, 1
      %p99 = scmp.eq.s32.totalorder %s19, 1
      %p100 = scmp.ne.s32.totalorder %s95, %s97
      %p101 = scmp.eq.s32.totalorder %s19, 0
      %p102 = por %p100, %p101
      %p103 = scmp.ne.s32.totalorder %s95, %s97
      %p104 = scmp.eq.s32.totalorder %s24, 1
      %p105 = por %p103, %p104
      %p106 = scmp.ne.s32.totalorder %s97, %s98
      %p107 = scmp.eq.s32.totalorder %s24, 0
      %p108 = por %p106, %p107
      %p109 = scmp.ne.s32.totalorder %s97, %s98
      %p110 = scmp.eq.s32.totalorder %s25, 1
      %p111 = por %p109, %p110
      %p113 = scmp.ne.s32.totalorder %s98, %s112
      %p114 = scmp.eq.s32.totalorder %s25, 0
      %p115 = por %p113, %p114
      %s117 = sadd.s32 %s116, 1
      %p120 = scmp.eq.s32.totalorder %s19, 1
      %p121 = scmp.ne.s32.totalorder %s116, %s118
      %p122 = scmp.eq.s32.totalorder %s19, 0
      %p123 = por %p121, %p122
      %p124 = scmp.ne.s32.totalorder %s116, %s118
      %p125 = scmp.eq.s32.totalorder %s24, 1
      %p126 = por %p124, %p125
      %p127 = scmp.ne.s32.totalorder %s118, %s119
      %p128 = scmp.eq.s32.totalorder %s24, 0
      %p129 = por %p127, %p128
      %p130 = scmp.ne.s32.totalorder %s118, %s119
      %p131 = scmp.eq.s32.totalorder %s25, 1
      %p132 = por %p130, %p131
      %p134 = scmp.ne.s32.totalorder %s119, %s133
      %p135 = scmp.eq.s32.totalorder %s25, 0
      %p136 = por %p134, %p135
      %s138 = sadd.s32 %s137, 1
      %p141 = scmp.eq.s32.totalorder %s19, 1
      %p142 = scmp.ne.s32.totalorder %s137, %s139
      %p143 = scmp.eq.s32.totalorder %s19, 0
      %p144 = por %p142, %p143
      %p145 = scmp.ne.s32.totalorder %s137, %s139
      %p146 = scmp.eq.s32.totalorder %s24, 1
      %p147 = por %p145, %p146
      %p148 = scmp.ne.s32.totalorder %s139, %s140
      %p149 = scmp.eq.s32.totalorder %s24, 0
      %p150 = por %p148, %p149
      %p151 = scmp.ne.s32.totalorder %s139, %s140
      %p152 = scmp.eq.s32.totalorder %s25, 1
      %p153 = por %p151, %p152
      %p155 = scmp.ne.s32.totalorder %s140, %s154
      %p156 = scmp.eq.s32.totalorder %s25, 0
      %p157 = por %p155, %p156
      %s159 = sadd.s32 %s158, 1
      %p162 = scmp.eq.s32.totalorder %s19, 1
      %p163 = scmp.ne.s32.totalorder %s158, %s160
      %p164 = scmp.eq.s32.totalorder %s19, 0
      %p165 = por %p163, %p164
      %p166 = scmp.ne.s32.totalorder %s158, %s160
      %p167 = scmp.eq.s32.totalorder %s24, 1
      %p168 = por %p166, %p167
      %p169 = scmp.ne.s32.totalorder %s160, %s161
      %p170 = scmp.eq.s32.totalorder %s24, 0
      %p171 = por %p169, %p170
      %p172 = scmp.ne.s32.totalorder %s160, %s161
      %p173 = scmp.eq.s32.totalorder %s25, 1
      %p174 = por %p172, %p173
      %p176 = scmp.ne.s32.totalorder %s161, %s175
      %p177 = scmp.eq.s32.totalorder %s25, 0
      %p178 = por %p176, %p177
      %s180 = sadd.s32 %s179, 1
      %p183 = scmp.eq.s32.totalorder %s19, 1
      %p184 = scmp.ne.s32.totalorder %s179, %s181
      %p185 = scmp.eq.s32.totalorder %s19, 0
      %p186 = por %p184, %p185
      %p187 = scmp.ne.s32.totalorder %s179, %s181
      %p188 = scmp.eq.s32.totalorder %s24, 1
      %p189 = por %p187, %p188
      %p190 = scmp.ne.s32.totalorder %s181, %s182
      %p191 = scmp.eq.s32.totalorder %s24, 0
      %p192 = por %p190, %p191
      %p193 = scmp.ne.s32.totalorder %s181, %s182
      %p194 = scmp.eq.s32.totalorder %s25, 1
      %p195 = por %p193, %p194
      %p197 = scmp.ne.s32.totalorder %s182, %s196
      %p198 = scmp.eq.s32.totalorder %s25, 0
      %p199 = por %p197, %p198
      %s201 = sadd.s32 %s200, 1
      %p204 = scmp.eq.s32.totalorder %s19, 1
      %p205 = scmp.ne.s32.totalorder %s200, %s202
      %p206 = scmp.eq.s32.totalorder %s19, 0
      %p207 = por %p205, %p206
      %p208 = scmp.ne.s32.totalorder %s200, %s202
      %p209 = scmp.eq.s32.totalorder %s24, 1
      %p210 = por %p208, %p209
      %p211 = scmp.ne.s32.totalorder %s202, %s203
      %p212 = scmp.eq.s32.totalorder %s24, 0
      %p213 = por %p211, %p212
      %p214 = scmp.ne.s32.totalorder %s202, %s203
      %p215 = scmp.eq.s32.totalorder %s25, 1
      %p216 = por %p214, %p215
      %p218 = scmp.ne.s32.totalorder %s203, %s217
      %p219 = scmp.eq.s32.totalorder %s25, 0
      %p220 = por %p218, %p219
      %s222 = sadd.s32 %s221, 1
      %p225 = scmp.eq.s32.totalorder %s19, 1
      %p226 = scmp.ne.s32.totalorder %s221, %s223
      %p227 = scmp.eq.s32.totalorder %s19, 0
      %p228 = por %p226, %p227
      %p229 = scmp.ne.s32.totalorder %s221, %s223
      %p230 = scmp.eq.s32.totalorder %s24, 1
      %p231 = por %p229, %p230
      %p232 = scmp.ne.s32.totalorder %s223, %s224
      %p233 = scmp.eq.s32.totalorder %s24, 0
      %p234 = por %p232, %p233
      %p235 = scmp.ne.s32.totalorder %s223, %s224
      %p236 = scmp.eq.s32.totalorder %s25, 1
      %p237 = por %p235, %p236
      %p239 = scmp.ne.s32.totalorder %s224, %s238
      %p240 = scmp.eq.s32.totalorder %s25, 0
      %p241 = por %p239, %p240
      %s242 = ssub.s32 %s19, %s26
      %p243 = scmp.eq.s32.totalorder %s242, 0
      %s245 = sadd.s32 %s244, 1
      %s246 = scalar_select %p243, %s244, %s245
      %p249 = pneg %p243
      %p250 = scmp.eq.s32.totalorder %s19, 1
      %p251 = por %p249, %p250
      %p252 = scmp.ne.s32.totalorder %s244, %s247
      %p253 = scmp.eq.s32.totalorder %s19, 0
      %p254 = por %p252, %p253
      %p255 = scmp.ne.s32.totalorder %s244, %s247
      %p256 = scmp.eq.s32.totalorder %s24, 1
      %p257 = por %p255, %p256
      %p258 = scmp.ne.s32.totalorder %s247, %s248
      %p259 = scmp.eq.s32.totalorder %s24, 0
      %p260 = por %p258, %p259
      %p261 = scmp.ne.s32.totalorder %s247, %s248
      %p262 = scmp.eq.s32.totalorder %s25, 1
      %p263 = por %p261, %p262
      %p265 = scmp.ne.s32.totalorder %s248, %s264
      %p266 = scmp.eq.s32.totalorder %s25, 0
      %p267 = por %p265, %p266
      %p268 = scmp.le.s32.totalorder 1, %s19
      %p269 = scmp.lt.s32.totalorder %s19, 3
      %p270 = pnand %p268, %p269
      %p271 = pneg %p270
      // Predicated region
      $region9: #{cnn1d_attention_forward.1} parent=5 // pred_check
        _
      $region10: #{cnn1d_attention_forward.1} parent=5 // pred_check_branch
        %273 = sbr.rel (%p270) target = $region12
      $region11: #{cnn1d_attention_forward.1} parent=5 // pred_region
        %s274 = ssub.s32 %s19, 1
        // Predicated region
        $region13: #{cnn1d_attention_forward.1} parent=11 // pred_check
          %p275 = pneg %p66
        $region14: #{cnn1d_attention_forward.1} parent=11 // pred_check_branch
          %277 = sbr.rel (%p275) target = $region16
        $region15: #{cnn1d_attention_forward.1} parent=11 // pred_region
          _
        $region16: #{cnn1d_attention_forward.1} parent=11 // pred_fallthru
          _
        // Predicated region
        $region17: #{cnn1d_attention_forward.1} parent=11 // pred_check
          %p278 = pneg %p87
        $region18: #{cnn1d_attention_forward.1} parent=11 // pred_check_branch
          %280 = sbr.rel (%p278) target = $region20
        $region19: #{cnn1d_attention_forward.1} parent=11 // pred_region
          _
        $region20: #{cnn1d_attention_forward.1} parent=11 // pred_fallthru
          _
        // Predicated region
        $region21: #{cnn1d_attention_forward.1} parent=11 // pred_check
          %p281 = pneg %p108
        $region22: #{cnn1d_attention_forward.1} parent=11 // pred_check_branch
          %283 = sbr.rel (%p281) target = $region24
        $region23: #{cnn1d_attention_forward.1} parent=11 // pred_region
          _
        $region24: #{cnn1d_attention_forward.1} parent=11 // pred_fallthru
          _
        // Predicated region
        $region25: #{cnn1d_attention_forward.1} parent=11 // pred_check
          %p284 = pneg %p129
        $region26: #{cnn1d_attention_forward.1} parent=11 // pred_check_branch
          %286 = sbr.rel (%p284) target = $region28
        $region27: #{cnn1d_attention_forward.1} parent=11 // pred_region
          _
        $region28: #{cnn1d_attention_forward.1} parent=11 // pred_fallthru
          _
        // Predicated region
        $region29: #{cnn1d_attention_forward.1} parent=11 // pred_check
          %p287 = pneg %p150
        $region30: #{cnn1d_attention_forward.1} parent=11 // pred_check_branch
          %289 = sbr.rel (%p287) target = $region32
        $region31: #{cnn1d_attention_forward.1} parent=11 // pred_region
          _
        $region32: #{cnn1d_attention_forward.1} parent=11 // pred_fallthru
          _
        // Predicated region
        $region33: #{cnn1d_attention_forward.1} parent=11 // pred_check
          %p290 = pneg %p171
        $region34: #{cnn1d_attention_forward.1} parent=11 // pred_check_branch
          %292 = sbr.rel (%p290) target = $region36
        $region35: #{cnn1d_attention_forward.1} parent=11 // pred_region
          _
        $region36: #{cnn1d_attention_forward.1} parent=11 // pred_fallthru
          _
        // Predicated region
        $region37: #{cnn1d_attention_forward.1} parent=11 // pred_check
          %p293 = pneg %p192
        $region38: #{cnn1d_attention_forward.1} parent=11 // pred_check_branch
          %295 = sbr.rel (%p293) target = $region40
        $region39: #{cnn1d_attention_forward.1} parent=11 // pred_region
          _
        $region40: #{cnn1d_attention_forward.1} parent=11 // pred_fallthru
          _
        // Predicated region
        $region41: #{cnn1d_attention_forward.1} parent=11 // pred_check
          %p296 = pneg %p213
        $region42: #{cnn1d_attention_forward.1} parent=11 // pred_check_branch
          %298 = sbr.rel (%p296) target = $region44
        $region43: #{cnn1d_attention_forward.1} parent=11 // pred_region
          _
        $region44: #{cnn1d_attention_forward.1} parent=11 // pred_fallthru
          _
        // Predicated region
        $region45: #{cnn1d_attention_forward.1} parent=11 // pred_check
          %p299 = pneg %p234
        $region46: #{cnn1d_attention_forward.1} parent=11 // pred_check_branch
          %301 = sbr.rel (%p299) target = $region48
        $region47: #{cnn1d_attention_forward.1} parent=11 // pred_region
          _
        $region48: #{cnn1d_attention_forward.1} parent=11 // pred_fallthru
          _
      $region12: #{cnn1d_attention_forward.1} parent=5 // pred_fallthru
        _
      %p302 = scmp.lt.s32.totalorder %s19, 2
      // Predicated region
      $region49: #{cnn1d_attention_forward.1} parent=5 // pred_check
        %p303 = pneg %p302
      $region50: #{cnn1d_attention_forward.1} parent=5 // pred_check_branch
        %305 = sbr.rel (%p303) target = $region52
      $region51: #{cnn1d_attention_forward.1} parent=5 // pred_region
        // Predicated region
        $region53: #{cnn1d_attention_forward.1} parent=51 // pred_check
          %p306 = pneg %p39
        $region54: #{cnn1d_attention_forward.1} parent=51 // pred_check_branch
          %308 = sbr.rel (%p306) target = $region56
        $region55: #{cnn1d_attention_forward.1} parent=51 // pred_region
          %s309 = smul.u32 16, %s19
          %p310 = scmp.lt.s32.totalorder %s309, 31
          %s311 = scalar_select %p310, %s309, 31
          %s312 = smul.addr %s311, 8
          %s313 = scalar_lea.vmem %s0, %s312
          %s314 = smul.u32 16, %s19
        $region56: #{cnn1d_attention_forward.1} parent=51 // pred_fallthru
          _
      $region52: #{cnn1d_attention_forward.1} parent=5 // pred_fallthru
        _
      %p315 = scmp.le.s32.totalorder 1, %s19
      %p316 = scmp.lt.s32.totalorder %s19, 3
      %p317 = pnand %p315, %p316
      %p318 = pneg %p317
      // Predicated region
      $region57: #{cnn1d_attention_forward.1} parent=5 // pred_check
        _
      $region58: #{cnn1d_attention_forward.1} parent=5 // pred_check_branch
        %320 = sbr.rel (%p317) target = $region60
      $region59: #{cnn1d_attention_forward.1} parent=5 // pred_region
        %s321 = ssub.s32 %s19, 1
        %s322 = smul.u32 16, %s24
        %p323 = scmp.lt.s32.totalorder %s322, 31
        %s324 = scalar_select %p323, %s322, 31
        %s325 = smul.addr %s324, 8
        %s326 = scalar_lea.vmem %s0, %s325
        %p327 = pneg %p45
        %p328 = pneg %p42
        %p329 = pneg %p66
        %p330 = pneg %p63
        %p331 = pneg %p87
        %p332 = pneg %p84
        %p333 = pneg %p108
        %p334 = pneg %p105
        %p335 = pneg %p129
        %p336 = pneg %p126
        %p337 = pneg %p150
        %p338 = pneg %p147
        %p339 = pneg %p171
        %p340 = pneg %p168
        %p341 = pneg %p192
        %p342 = pneg %p189
        %p343 = pneg %p213
        %p344 = pneg %p210
        %p345 = pneg %p234
        %p346 = pneg %p231
        %p347 = pneg %p260
        %p348 = pneg %p257
        %s349 = sand.u32 %s247, 1
        %s350 = scalar_lea.sflag [#allocation6], %s349
        %s351 = sand.u32 %s247, 1
        %s352 = smul.addr %s351, 8
        %s353 = scalar_lea.vmem [#allocation5], %s352
        %s354 = smul.u32 16, %s24
        %p355 = scmp.lt.s32.totalorder %s354, 31
        %s356 = scalar_select %p355, %s354, 31
        %s357 = smul.addr %s356, 8
        %s358 = scalar_lea.vmem %s0, %s357
        %s359 = smul.u32 16, %s24
        %v360 = vld [vmem:[%s358] sm:$0xff]
        %v361 = vld [vmem:[%s358 + $0x8] sm:$0xff]
        %v362 = vld [vmem:[%s358 + $0x10] sm:$0xff]
        %v363 = vld [vmem:[%s358 + $0x18] sm:$0xff]
        %v364 = vld [vmem:[%s358 + $0x20] sm:$0xff]
        %v365 = vld [vmem:[%s358 + $0x28] sm:$0xff]
        %v366 = vld [vmem:[%s358 + $0x30] sm:$0xff]
        %v367 = vld [vmem:[%s358 + $0x38] sm:$0xff]
        %v368 = vld [vmem:[%s358 + $0x40] sm:$0xff]
        %v369 = vld [vmem:[%s358 + $0x48] sm:$0xff]
        %v370 = vld [vmem:[%s358 + $0x50] sm:$0xff]
        %v371 = vld [vmem:[%s358 + $0x58] sm:$0xff]
        %v372 = vld [vmem:[%s358 + $0x60] sm:$0xff]
        %v373 = vld [vmem:[%s358 + $0x68] sm:$0xff]
        %v374 = vld [vmem:[%s358 + $0x70] sm:$0xff]
        %v375 = vld [vmem:[%s358 + $0x78] sm:$0xff]
        %v376 = vlaneseq
        %v377 = vshrl.u32 %v376, 7
        %v378 = vadd.s32 %v377, 8
        %v379 = vadd.s32 %v377, 16
        %v380 = vadd.s32 %v377, 24
        %v381 = vadd.s32 %v377, 32
        %v382 = vadd.s32 %v377, 40
        %v383 = vadd.s32 %v377, 48
        %v384 = vadd.s32 %v377, 56
        %v385 = vadd.s32 %v377, 64
        %v386 = vadd.s32 %v377, 72
        %v387 = vadd.s32 %v377, 80
        %v388 = vadd.s32 %v377, 88
        %v389 = vadd.s32 %v377, 96
        %v390 = vadd.s32 %v377, 104
        %v391 = vadd.s32 %v377, 112
        %v392 = vadd.s32 %v377, 120
        %vm393 = vcmp.lt.s32.totalorder %v377, 0
        %v394 = vsub.s32 0, %v377
        %v395 = vsel %vm393, %v394, %v377
        %v396 = vshrl.u32 %v395, 4
        %v397 = vand.u32 %v395, 15
        %v398 = vsub.s32 0, %v397
        %v399 = vsel %vm393, %v398, %v397
        %vm400 = vcmp.lt.s32.totalorder %v378, 0
        %v401 = vsub.s32 0, %v378
        %v402 = vsel %vm400, %v401, %v378
        %v403 = vshrl.u32 %v402, 4
        %v404 = vand.u32 %v402, 15
        %v405 = vsub.s32 0, %v404
        %v406 = vsel %vm400, %v405, %v404
        %vm407 = vcmp.lt.s32.totalorder %v379, 0
        %v408 = vsub.s32 0, %v379
        %v409 = vsel %vm407, %v408, %v379
        %v410 = vshrl.u32 %v409, 4
        %v411 = vand.u32 %v409, 15
        %v412 = vsub.s32 0, %v411
        %v413 = vsel %vm407, %v412, %v411
        %vm414 = vcmp.lt.s32.totalorder %v380, 0
        %v415 = vsub.s32 0, %v380
        %v416 = vsel %vm414, %v415, %v380
        %v417 = vshrl.u32 %v416, 4
        %v418 = vand.u32 %v416, 15
        %v419 = vsub.s32 0, %v418
        %v420 = vsel %vm414, %v419, %v418
        %vm421 = vcmp.lt.s32.totalorder %v381, 0
        %v422 = vsub.s32 0, %v381
        %v423 = vsel %vm421, %v422, %v381
        %v424 = vshrl.u32 %v423, 4
        %v425 = vand.u32 %v423, 15
        %v426 = vsub.s32 0, %v425
        %v427 = vsel %vm421, %v426, %v425
        %vm428 = vcmp.lt.s32.totalorder %v382, 0
        %v429 = vsub.s32 0, %v382
        %v430 = vsel %vm428, %v429, %v382
        %v431 = vshrl.u32 %v430, 4
        %v432 = vand.u32 %v430, 15
        %v433 = vsub.s32 0, %v432
        %v434 = vsel %vm428, %v433, %v432
        %vm435 = vcmp.lt.s32.totalorder %v383, 0
        %v436 = vsub.s32 0, %v383
        %v437 = vsel %vm435, %v436, %v383
        %v438 = vshrl.u32 %v437, 4
        %v439 = vand.u32 %v437, 15
        %v440 = vsub.s32 0, %v439
        %v441 = vsel %vm435, %v440, %v439
        %vm442 = vcmp.lt.s32.totalorder %v384, 0
        %v443 = vsub.s32 0, %v384
        %v444 = vsel %vm442, %v443, %v384
        %v445 = vshrl.u32 %v444, 4
        %v446 = vand.u32 %v444, 15
        %v447 = vsub.s32 0, %v446
        %v448 = vsel %vm442, %v447, %v446
        %vm449 = vcmp.lt.s32.totalorder %v385, 0
        %v450 = vsub.s32 0, %v385
        %v451 = vsel %vm449, %v450, %v385
        %v452 = vshrl.u32 %v451, 4
        %v453 = vand.u32 %v451, 15
        %v454 = vsub.s32 0, %v453
        %v455 = vsel %vm449, %v454, %v453
        %vm456 = vcmp.lt.s32.totalorder %v386, 0
        %v457 = vsub.s32 0, %v386
        %v458 = vsel %vm456, %v457, %v386
        %v459 = vshrl.u32 %v458, 4
        %v460 = vand.u32 %v458, 15
        %v461 = vsub.s32 0, %v460
        %v462 = vsel %vm456, %v461, %v460
        %vm463 = vcmp.lt.s32.totalorder %v387, 0
        %v464 = vsub.s32 0, %v387
        %v465 = vsel %vm463, %v464, %v387
        %v466 = vshrl.u32 %v465, 4
        %v467 = vand.u32 %v465, 15
        %v468 = vsub.s32 0, %v467
        %v469 = vsel %vm463, %v468, %v467
        %vm470 = vcmp.lt.s32.totalorder %v388, 0
        %v471 = vsub.s32 0, %v388
        %v472 = vsel %vm470, %v471, %v388
        %v473 = vshrl.u32 %v472, 4
        %v474 = vand.u32 %v472, 15
        %v475 = vsub.s32 0, %v474
        %v476 = vsel %vm470, %v475, %v474
        %vm477 = vcmp.lt.s32.totalorder %v389, 0
        %v478 = vsub.s32 0, %v389
        %v479 = vsel %vm477, %v478, %v389
        %v480 = vshrl.u32 %v479, 4
        %v481 = vand.u32 %v479, 15
        %v482 = vsub.s32 0, %v481
        %v483 = vsel %vm477, %v482, %v481
        %vm484 = vcmp.lt.s32.totalorder %v390, 0
        %v485 = vsub.s32 0, %v390
        %v486 = vsel %vm484, %v485, %v390
        %v487 = vshrl.u32 %v486, 4
        %v488 = vand.u32 %v486, 15
        %v489 = vsub.s32 0, %v488
        %v490 = vsel %vm484, %v489, %v488
        %vm491 = vcmp.lt.s32.totalorder %v391, 0
        %v492 = vsub.s32 0, %v391
        %v493 = vsel %vm491, %v492, %v391
        %v494 = vshrl.u32 %v493, 4
        %v495 = vand.u32 %v493, 15
        %v496 = vsub.s32 0, %v495
        %v497 = vsel %vm491, %v496, %v495
        %vm498 = vcmp.lt.s32.totalorder %v392, 0
        %v499 = vsub.s32 0, %v392
        %v500 = vsel %vm498, %v499, %v392
        %v501 = vshrl.u32 %v500, 4
        %v502 = vand.u32 %v500, 15
        %v503 = vsub.s32 0, %v502
        %v504 = vsel %vm498, %v503, %v502
        %vm505 = vcmp.ne.s32.totalorder %v399, 0
        %vm506 = vcmp.ne.s32.totalorder %v406, 0
        %vm507 = vcmp.ne.s32.totalorder %v413, 0
        %vm508 = vcmp.ne.s32.totalorder %v420, 0
        %vm509 = vcmp.ne.s32.totalorder %v427, 0
        %vm510 = vcmp.ne.s32.totalorder %v434, 0
        %vm511 = vcmp.ne.s32.totalorder %v441, 0
        %vm512 = vcmp.ne.s32.totalorder %v448, 0
        %vm513 = vcmp.ne.s32.totalorder %v455, 0
        %vm514 = vcmp.ne.s32.totalorder %v462, 0
        %vm515 = vcmp.ne.s32.totalorder %v469, 0
        %vm516 = vcmp.ne.s32.totalorder %v476, 0
        %vm517 = vcmp.ne.s32.totalorder %v483, 0
        %vm518 = vcmp.ne.s32.totalorder %v490, 0
        %vm519 = vcmp.ne.s32.totalorder %v497, 0
        %vm520 = vcmp.ne.s32.totalorder %v504, 0
        %vm521 = vcmp.lt.s32.totalorder %v399, 0
        %vm522 = vcmp.lt.s32.totalorder %v406, 0
        %vm523 = vcmp.lt.s32.totalorder %v413, 0
        %vm524 = vcmp.lt.s32.totalorder %v420, 0
        %vm525 = vcmp.lt.s32.totalorder %v427, 0
        %vm526 = vcmp.lt.s32.totalorder %v434, 0
        %vm527 = vcmp.lt.s32.totalorder %v441, 0
        %vm528 = vcmp.lt.s32.totalorder %v448, 0
        %vm529 = vcmp.lt.s32.totalorder %v455, 0
        %vm530 = vcmp.lt.s32.totalorder %v462, 0
        %vm531 = vcmp.lt.s32.totalorder %v469, 0
        %vm532 = vcmp.lt.s32.totalorder %v476, 0
        %vm533 = vcmp.lt.s32.totalorder %v483, 0
        %vm534 = vcmp.lt.s32.totalorder %v490, 0
        %vm535 = vcmp.lt.s32.totalorder %v497, 0
        %vm536 = vcmp.lt.s32.totalorder %v504, 0
        %vm537 = vmand %vm521, %vm505
        %vm538 = vmand %vm522, %vm506
        %vm539 = vmand %vm523, %vm507
        %vm540 = vmand %vm524, %vm508
        %vm541 = vmand %vm525, %vm509
        %vm542 = vmand %vm526, %vm510
        %vm543 = vmand %vm527, %vm511
        %vm544 = vmand %vm528, %vm512
        %vm545 = vmand %vm529, %vm513
        %vm546 = vmand %vm530, %vm514
        %vm547 = vmand %vm531, %vm515
        %vm548 = vmand %vm532, %vm516
        %vm549 = vmand %vm533, %vm517
        %vm550 = vmand %vm534, %vm518
        %vm551 = vmand %vm535, %vm519
        %vm552 = vmand %vm536, %vm520
        %v553 = vadd.s32 %v399, 16
        %v554 = vadd.s32 %v406, 16
        %v555 = vadd.s32 %v413, 16
        %v556 = vadd.s32 %v420, 16
        %v557 = vadd.s32 %v427, 16
        %v558 = vadd.s32 %v434, 16
        %v559 = vadd.s32 %v441, 16
        %v560 = vadd.s32 %v448, 16
        %v561 = vadd.s32 %v455, 16
        %v562 = vadd.s32 %v462, 16
        %v563 = vadd.s32 %v469, 16
        %v564 = vadd.s32 %v476, 16
        %v565 = vadd.s32 %v483, 16
        %v566 = vadd.s32 %v490, 16
        %v567 = vadd.s32 %v497, 16
        %v568 = vadd.s32 %v504, 16
        %v569 = vsel %vm537, %v553, %v399
        %v570 = vsel %vm538, %v554, %v406
        %v571 = vsel %vm539, %v555, %v413
        %v572 = vsel %vm540, %v556, %v420
        %v573 = vsel %vm541, %v557, %v427
        %v574 = vsel %vm542, %v558, %v434
        %v575 = vsel %vm543, %v559, %v441
        %v576 = vsel %vm544, %v560, %v448
        %v577 = vsel %vm545, %v561, %v455
        %v578 = vsel %vm546, %v562, %v462
        %v579 = vsel %vm547, %v563, %v469
        %v580 = vsel %vm548, %v564, %v476
        %v581 = vsel %vm549, %v565, %v483
        %v582 = vsel %vm550, %v566, %v490
        %v583 = vsel %vm551, %v567, %v497
        %v584 = vsel %vm552, %v568, %v504
        %vm585 = vcmp.eq.s32.totalorder %v569, 0
        %vm586 = vcmp.eq.s32.totalorder %v570, 0
        %vm587 = vcmp.eq.s32.totalorder %v571, 0
        %vm588 = vcmp.eq.s32.totalorder %v572, 0
        %vm589 = vcmp.eq.s32.totalorder %v573, 0
        %vm590 = vcmp.eq.s32.totalorder %v574, 0
        %vm591 = vcmp.eq.s32.totalorder %v575, 0
        %vm592 = vcmp.eq.s32.totalorder %v576, 0
        %vm593 = vcmp.eq.s32.totalorder %v577, 0
        %vm594 = vcmp.eq.s32.totalorder %v578, 0
        %vm595 = vcmp.eq.s32.totalorder %v579, 0
        %vm596 = vcmp.eq.s32.totalorder %v580, 0
        %vm597 = vcmp.eq.s32.totalorder %v581, 0
        %vm598 = vcmp.eq.s32.totalorder %v582, 0
        %vm599 = vcmp.eq.s32.totalorder %v583, 0
        %vm600 = vcmp.eq.s32.totalorder %v584, 0
        %v601 = vrot.slane %v360, 7
        %v602 = vrot.slane %v361, 7
        %v603 = vrot.slane %v362, 7
        %v604 = vrot.slane %v363, 7
        %v605 = vrot.slane %v364, 7
        %v606 = vrot.slane %v365, 7
        %v607 = vrot.slane %v366, 7
        %v608 = vrot.slane %v367, 7
        %v609 = vrot.slane %v368, 7
        %v610 = vrot.slane %v369, 7
        %v611 = vrot.slane %v370, 7
        %v612 = vrot.slane %v371, 7
        %v613 = vrot.slane %v372, 7
        %v614 = vrot.slane %v373, 7
        %v615 = vrot.slane %v374, 7
        %v616 = vrot.slane %v375, 7
        %vm617 = vcmp.lt.s32.totalorder %v377, 1
        %v618 = vsel %vm617, %v615, %v616
        %v619 = vsel %vm617, %v614, %v615
        %v620 = vsel %vm617, %v613, %v614
        %v621 = vsel %vm617, %v612, %v613
        %v622 = vsel %vm617, %v611, %v612
        %v623 = vsel %vm617, %v610, %v611
        %v624 = vsel %vm617, %v609, %v610
        %v625 = vsel %vm617, %v608, %v609
        %v626 = vsel %vm617, %v607, %v608
        %v627 = vsel %vm617, %v606, %v607
        %v628 = vsel %vm617, %v605, %v606
        %v629 = vsel %vm617, %v604, %v605
        %v630 = vsel %vm617, %v603, %v604
        %v631 = vsel %vm617, %v602, %v603
        %v632 = vsel %vm617, %v601, %v602
        %v633 = vsel %vm617, %v616, %v601
        %v634 = vsel %vm585, 0.0, %v633
        %v635 = vsel %vm586, 0.0, %v632
        %v636 = vsel %vm587, 0.0, %v631
        %v637 = vsel %vm588, 0.0, %v630
        %v638 = vsel %vm589, 0.0, %v629
        %v639 = vsel %vm590, 0.0, %v628
        %v640 = vsel %vm591, 0.0, %v627
        %v641 = vsel %vm592, 0.0, %v626
        %v642 = vsel %vm593, 0.0, %v625
        %v643 = vsel %vm594, 0.0, %v624
        %v644 = vsel %vm595, 0.0, %v623
        %v645 = vsel %vm596, 0.0, %v622
        %v646 = vsel %vm597, 0.0, %v621
        %v647 = vsel %vm598, 0.0, %v620
        %v648 = vsel %vm599, 0.0, %v619
        %v649 = vsel %vm600, 0.0, %v618
        %vm650 = vcmp.eq.s32.totalorder %v569, 15
        %vm651 = vcmp.eq.s32.totalorder %v570, 15
        %vm652 = vcmp.eq.s32.totalorder %v571, 15
        %vm653 = vcmp.eq.s32.totalorder %v572, 15
        %vm654 = vcmp.eq.s32.totalorder %v573, 15
        %vm655 = vcmp.eq.s32.totalorder %v574, 15
        %vm656 = vcmp.eq.s32.totalorder %v575, 15
        %vm657 = vcmp.eq.s32.totalorder %v576, 15
        %vm658 = vcmp.eq.s32.totalorder %v577, 15
        %vm659 = vcmp.eq.s32.totalorder %v578, 15
        %vm660 = vcmp.eq.s32.totalorder %v579, 15
        %vm661 = vcmp.eq.s32.totalorder %v580, 15
        %vm662 = vcmp.eq.s32.totalorder %v581, 15
        %vm663 = vcmp.eq.s32.totalorder %v582, 15
        %vm664 = vcmp.eq.s32.totalorder %v583, 15
        %vm665 = vcmp.eq.s32.totalorder %v584, 15
        %v666 = vrot.slane %v360, 1
        %v667 = vrot.slane %v361, 1
        %v668 = vrot.slane %v362, 1
        %v669 = vrot.slane %v363, 1
        %v670 = vrot.slane %v364, 1
        %v671 = vrot.slane %v365, 1
        %v672 = vrot.slane %v366, 1
        %v673 = vrot.slane %v367, 1
        %v674 = vrot.slane %v368, 1
        %v675 = vrot.slane %v369, 1
        %v676 = vrot.slane %v370, 1
        %v677 = vrot.slane %v371, 1
        %v678 = vrot.slane %v372, 1
        %v679 = vrot.slane %v373, 1
        %v680 = vrot.slane %v374, 1
        %v681 = vrot.slane %v375, 1
        %vm682 = vcmp.lt.s32.totalorder %v377, 7
        %v683 = vsel %vm682, %v680, %v681
        %v684 = vsel %vm682, %v679, %v680
        %v685 = vsel %vm682, %v678, %v679
        %v686 = vsel %vm682, %v677, %v678
        %v687 = vsel %vm682, %v676, %v677
        %v688 = vsel %vm682, %v675, %v676
        %v689 = vsel %vm682, %v674, %v675
        %v690 = vsel %vm682, %v673, %v674
        %v691 = vsel %vm682, %v672, %v673
        %v692 = vsel %vm682, %v671, %v672
        %v693 = vsel %vm682, %v670, %v671
        %v694 = vsel %vm682, %v669, %v670
        %v695 = vsel %vm682, %v668, %v669
        %v696 = vsel %vm682, %v667, %v668
        %v697 = vsel %vm682, %v666, %v667
        %v698 = vsel %vm682, %v681, %v666
        %v699 = vsel %vm650, 0.0, %v697
        %v700 = vsel %vm651, 0.0, %v696
        %v701 = vsel %vm652, 0.0, %v695
        %v702 = vsel %vm653, 0.0, %v694
        %v703 = vsel %vm654, 0.0, %v693
        %v704 = vsel %vm655, 0.0, %v692
        %v705 = vsel %vm656, 0.0, %v691
        %v706 = vsel %vm657, 0.0, %v690
        %v707 = vsel %vm658, 0.0, %v689
        %v708 = vsel %vm659, 0.0, %v688
        %v709 = vsel %vm660, 0.0, %v687
        %v710 = vsel %vm661, 0.0, %v686
        %v711 = vsel %vm662, 0.0, %v685
        %v712 = vsel %vm663, 0.0, %v684
        %v713 = vsel %vm664, 0.0, %v683
        %v714 = vsel %vm665, 0.0, %v698
        %731 = vrot.lane.b32.xlu0 %v360, 4
        %v732 = vpop.permute.xlu0 %731
        %733 = vrot.lane.b32.xlu0 %v361, 4
        %v734 = vpop.permute.xlu0 %733
        %735 = vrot.lane.b32.xlu0 %v362, 4
        %v736 = vpop.permute.xlu0 %735
        %737 = vrot.lane.b32.xlu0 %v363, 4
        %v738 = vpop.permute.xlu0 %737
        %739 = vrot.lane.b32.xlu0 %v364, 4
        %v740 = vpop.permute.xlu0 %739
        %741 = vrot.lane.b32.xlu0 %v365, 4
        %v742 = vpop.permute.xlu0 %741
        %743 = vrot.lane.b32.xlu0 %v366, 4
        %v744 = vpop.permute.xlu0 %743
        %745 = vrot.lane.b32.xlu0 %v367, 4
        %v746 = vpop.permute.xlu0 %745
        %747 = vrot.lane.b32.xlu0 %v368, 4
        %v748 = vpop.permute.xlu0 %747
        %749 = vrot.lane.b32.xlu0 %v369, 4
        %v750 = vpop.permute.xlu0 %749
        %751 = vrot.lane.b32.xlu0 %v370, 4
        %v752 = vpop.permute.xlu0 %751
        %753 = vrot.lane.b32.xlu0 %v371, 4
        %v754 = vpop.permute.xlu0 %753
        %755 = vrot.lane.b32.xlu0 %v372, 4
        %v756 = vpop.permute.xlu0 %755
        %757 = vrot.lane.b32.xlu0 %v373, 4
        %v758 = vpop.permute.xlu0 %757
        %759 = vrot.lane.b32.xlu0 %v374, 4
        %v760 = vpop.permute.xlu0 %759
        %761 = vrot.lane.b32.xlu0 %v375, 4
        %v762 = vpop.permute.xlu0 %761
        %795 = vrot.lane.b32.xlu0 %v699, 8
        %v796 = vpop.permute.xlu0 %795
        %797 = vrot.lane.b32.xlu0 %v700, 8
        %v798 = vpop.permute.xlu0 %797
        %799 = vrot.lane.b32.xlu0 %v701, 8
        %v800 = vpop.permute.xlu0 %799
        %801 = vrot.lane.b32.xlu0 %v702, 8
        %v802 = vpop.permute.xlu0 %801
        %803 = vrot.lane.b32.xlu0 %v703, 8
        %v804 = vpop.permute.xlu0 %803
        %805 = vrot.lane.b32.xlu0 %v704, 8
        %v806 = vpop.permute.xlu0 %805
        %807 = vrot.lane.b32.xlu0 %v705, 8
        %v808 = vpop.permute.xlu0 %807
        %809 = vrot.lane.b32.xlu0 %v706, 8
        %v810 = vpop.permute.xlu0 %809
        %811 = vrot.lane.b32.xlu0 %v707, 8
        %v812 = vpop.permute.xlu0 %811
        %813 = vrot.lane.b32.xlu0 %v708, 8
        %v814 = vpop.permute.xlu0 %813
        %815 = vrot.lane.b32.xlu0 %v709, 8
        %v816 = vpop.permute.xlu0 %815
        %817 = vrot.lane.b32.xlu0 %v710, 8
        %v818 = vpop.permute.xlu0 %817
        %819 = vrot.lane.b32.xlu0 %v711, 8
        %v820 = vpop.permute.xlu0 %819
        %821 = vrot.lane.b32.xlu0 %v712, 8
        %v822 = vpop.permute.xlu0 %821
        %823 = vrot.lane.b32.xlu0 %v713, 8
        %v824 = vpop.permute.xlu0 %823
        %825 = vrot.lane.b32.xlu0 %v714, 8
        %v826 = vpop.permute.xlu0 %825
        %vm843 = vcmask 31744
        %v844 = vsel %vm843, %v634, %v732
        %v845 = vsel %vm843, %v635, %v734
        %v846 = vsel %vm843, %v636, %v736
        %v847 = vsel %vm843, %v637, %v738
        %v848 = vsel %vm843, %v638, %v740
        %v849 = vsel %vm843, %v639, %v742
        %v850 = vsel %vm843, %v640, %v744
        %v851 = vsel %vm843, %v641, %v746
        %v852 = vsel %vm843, %v642, %v748
        %v853 = vsel %vm843, %v643, %v750
        %v854 = vsel %vm843, %v644, %v752
        %v855 = vsel %vm843, %v645, %v754
        %v856 = vsel %vm843, %v646, %v756
        %v857 = vsel %vm843, %v647, %v758
        %v858 = vsel %vm843, %v648, %v760
        %v859 = vsel %vm843, %v649, %v762
        %vm860 = vcmask 64512
        %v861 = vsel %vm860, %v844, %v796
        %v862 = vsel %vm860, %v845, %v798
        %v863 = vsel %vm860, %v846, %v800
        %v864 = vsel %vm860, %v847, %v802
        %v865 = vsel %vm860, %v848, %v804
        %v866 = vsel %vm860, %v849, %v806
        %v867 = vsel %vm860, %v850, %v808
        %v868 = vsel %vm860, %v851, %v810
        %v869 = vsel %vm860, %v852, %v812
        %v870 = vsel %vm860, %v853, %v814
        %v871 = vsel %vm860, %v854, %v816
        %v872 = vsel %vm860, %v855, %v818
        %v873 = vsel %vm860, %v856, %v820
        %v874 = vsel %vm860, %v857, %v822
        %v875 = vsel %vm860, %v858, %v824
        %v876 = vsel %vm860, %v859, %v826
        %v877 = vld [vmem:[%s2] sm:$0xff]
        %v878 = vld [vmem:[%s2 + $0x8] sm:$0xf]
        %v879 = vld [vmem:[%s3] sm:$0x1]
        %v881 = vlaneseq
        %v882 = vshrl.u32 %v881, 7
        %v883 = vsub.s32 0, %v882
        %v884 = vrot.slane %v879, %v883
        %vm886 = vcmask 97280
        %v888 = vsel %vm886, %v861, 0
        %v891 = vsel %vm886, %v862, 0
        %v894 = vsel %vm886, %v863, 0
        %v897 = vsel %vm886, %v864, 0
        %v900 = vsel %vm886, %v865, 0
        %v903 = vsel %vm886, %v866, 0
        %v906 = vsel %vm886, %v867, 0
        %v909 = vsel %vm886, %v868, 0
        %v912 = vsel %vm886, %v869, 0
        %v915 = vsel %vm886, %v870, 0
        %v918 = vsel %vm886, %v871, 0
        %v921 = vsel %vm886, %v872, 0
        %v924 = vsel %vm886, %v873, 0
        %v927 = vsel %vm886, %v874, 0
        %v930 = vsel %vm886, %v875, 0
        %v933 = vsel %vm886, %v876, 0
        %vm935 = vcmask 1043456
        %v937 = vsel %vm935, %v878, 0
        %939 = vmatprep.subr.mxu0 0.0
        %940 = vmatpush1.msra.mxu0 %v877
        %941 = vmatprep.subr.mxu0 0.0
        %942 = vmatpush1.msra.mxu0 %v937
        %943 = vmatprep.subr.mxu0 0.0
        %944 = vmatpush1.msra.mxu0 0.0
        %945 = vmatprep.subr.mxu0 0.0
        %946 = vmatpush1.msra.mxu0 0.0
        %947 = vmatprep.subr.mxu0 0.0
        %948 = vmatpush1.msra.mxu0 0.0
        %949 = vmatprep.subr.mxu0 0.0
        %950 = vmatpush1.msra.mxu0 0.0
        %951 = vmatprep.subr.mxu0 0.0
        %952 = vmatpush1.msra.mxu0 0.0
        %953 = vmatprep.subr.mxu0 0.0
        %954 = vmatpush1.msra.mxu0 0.0
        %955 = vmatprep.subr.mxu0 0.0
        %956 = vmatpush1.msra.mxu0 0.0
        %957 = vmatprep.subr.mxu0 0.0
        %958 = vmatpush1.msra.mxu0 0.0
        %959 = vmatprep.subr.mxu0 0.0
        %960 = vmatpush1.msra.mxu0 0.0
        %961 = vmatprep.subr.mxu0 0.0
        %962 = vmatpush1.msra.mxu0 0.0
        %963 = vmatprep.subr.mxu0 0.0
        %964 = vmatpush1.msra.mxu0 0.0
        %965 = vmatprep.subr.mxu0 0.0
        %966 = vmatpush1.msra.mxu0 0.0
        %967 = vmatprep.subr.mxu0 0.0
        %968 = vmatpush1.msra.mxu0 0.0
        %969 = vmatprep.subr.mxu0 0.0
        %970 = vmatpush1.msra.mxu0 0.0
        %971 = vmatprep.subr.mxu0 0.0
        %972 = vmatpush1.msra.mxu0 0.0
        %973 = vmatprep.subr.mxu0 0.0
        %974 = vmatpush1.msra.mxu0 0.0
        %975 = vmatprep.subr.mxu0 0.0
        %976 = vmatpush1.msra.mxu0 0.0
        %977 = vmatprep.subr.mxu0 0.0
        %978 = vmatpush1.msra.mxu0 0.0
        %979 = vmatprep.subr.mxu0 0.0
        %980 = vmatpush1.msra.mxu0 0.0
        %981 = vmatprep.subr.mxu0 0.0
        %982 = vmatpush1.msra.mxu0 0.0
        %983 = vmatprep.subr.mxu0 0.0
        %984 = vmatpush1.msra.mxu0 0.0
        %985 = vmatprep.subr.mxu0 0.0
        %986 = vmatpush1.msra.mxu0 0.0
        %987 = vmatprep.subr.mxu0 0.0
        %988 = vmatpush1.msra.mxu0 0.0
        %989 = vmatprep.subr.mxu0 0.0
        %990 = vmatpush1.msra.mxu0 0.0
        %991 = vmatprep.subr.mxu0 0.0
        %992 = vmatpush1.msra.mxu0 0.0
        %993 = vmatprep.subr.mxu0 0.0
        %994 = vmatpush1.msra.mxu0 0.0
        %995 = vmatprep.subr.mxu0 0.0
        %996 = vmatpush1.msra.mxu0 0.0
        %997 = vmatprep.subr.mxu0 0.0
        %998 = vmatpush1.msra.mxu0 0.0
        %999 = vmatprep.subr.mxu0 0.0
        %1000 = vmatpush1.msra.mxu0 0.0
        %1001 = vmatprep.subr.mxu0 0.0
        %1002 = vmatpush1.msra.mxu0 0.0
        %1003 = vmatprep.mubr.f32.mxu0 0.0
        %1004 = vmatmul.mubr.f32.gmra.mrb[0].mxu0 %v888
        %v1005 = vpop.f32.mrb[0].mxu0
        %v1006 = vadd.f32 %v884, %v1005
        %v1007 = vpop.f32.mrb[0].mxu0
        %1008 = vmatprep.mubr.f32.mxu0 0.0
        %1009 = vmatmul.mubr.f32.gmra.mrb[0].mxu0 %v891
        %v1010 = vpop.f32.mrb[0].mxu0
        %v1011 = vadd.f32 %v884, %v1010
        %v1012 = vpop.f32.mrb[0].mxu0
        %1013 = vmatprep.mubr.f32.mxu0 0.0
        %1014 = vmatmul.mubr.f32.gmra.mrb[0].mxu0 %v894
        %v1015 = vpop.f32.mrb[0].mxu0
        %v1016 = vadd.f32 %v884, %v1015
        %v1017 = vpop.f32.mrb[0].mxu0
        %1018 = vmatprep.mubr.f32.mxu0 0.0
        %1019 = vmatmul.mubr.f32.gmra.mrb[0].mxu0 %v897
        %v1020 = vpop.f32.mrb[0].mxu0
        %v1021 = vadd.f32 %v884, %v1020
        %v1022 = vpop.f32.mrb[0].mxu0
        %1023 = vmatprep.mubr.f32.mxu0 0.0
        %1024 = vmatmul.mubr.f32.gmra.mrb[0].mxu0 %v900
        %v1025 = vpop.f32.mrb[0].mxu0
        %v1026 = vadd.f32 %v884, %v1025
        %v1027 = vpop.f32.mrb[0].mxu0
        %1028 = vmatprep.mubr.f32.mxu0 0.0
        %1029 = vmatmul.mubr.f32.gmra.mrb[0].mxu0 %v903
        %v1030 = vpop.f32.mrb[0].mxu0
        %v1031 = vadd.f32 %v884, %v1030
        %v1032 = vpop.f32.mrb[0].mxu0
        %1033 = vmatprep.mubr.f32.mxu0 0.0
        %1034 = vmatmul.mubr.f32.gmra.mrb[0].mxu0 %v906
        %v1035 = vpop.f32.mrb[0].mxu0
        %v1036 = vadd.f32 %v884, %v1035
        %v1037 = vpop.f32.mrb[0].mxu0
        %1038 = vmatprep.mubr.f32.mxu0 0.0
        %1039 = vmatmul.mubr.f32.gmra.mrb[0].mxu0 %v909
        %v1040 = vpop.f32.mrb[0].mxu0
        %v1041 = vadd.f32 %v884, %v1040
        %v1042 = vpop.f32.mrb[0].mxu0
        %1043 = vmatprep.mubr.f32.mxu0 0.0
        %1044 = vmatmul.mubr.f32.gmra.mrb[0].mxu0 %v912
        %v1045 = vpop.f32.mrb[0].mxu0
        %v1046 = vadd.f32 %v884, %v1045
        %v1047 = vpop.f32.mrb[0].mxu0
        %1048 = vmatprep.mubr.f32.mxu0 0.0
        %1049 = vmatmul.mubr.f32.gmra.mrb[0].mxu0 %v915
        %v1050 = vpop.f32.mrb[0].mxu0
        %v1051 = vadd.f32 %v884, %v1050
        %v1052 = vpop.f32.mrb[0].mxu0
        %1053 = vmatprep.mubr.f32.mxu0 0.0
        %1054 = vmatmul.mubr.f32.gmra.mrb[0].mxu0 %v918
        %v1055 = vpop.f32.mrb[0].mxu0
        %v1056 = vadd.f32 %v884, %v1055
        %v1057 = vpop.f32.mrb[0].mxu0
        %1058 = vmatprep.mubr.f32.mxu0 0.0
        %1059 = vmatmul.mubr.f32.gmra.mrb[0].mxu0 %v921
        %v1060 = vpop.f32.mrb[0].mxu0
        %v1061 = vadd.f32 %v884, %v1060
        %v1062 = vpop.f32.mrb[0].mxu0
        %1063 = vmatprep.mubr.f32.mxu0 0.0
        %1064 = vmatmul.mubr.f32.gmra.mrb[0].mxu0 %v924
        %v1065 = vpop.f32.mrb[0].mxu0
        %v1066 = vadd.f32 %v884, %v1065
        %v1067 = vpop.f32.mrb[0].mxu0
        %1068 = vmatprep.mubr.f32.mxu0 0.0
        %1069 = vmatmul.mubr.f32.gmra.mrb[0].mxu0 %v927
        %v1070 = vpop.f32.mrb[0].mxu0
        %v1071 = vadd.f32 %v884, %v1070
        %v1072 = vpop.f32.mrb[0].mxu0
        %1073 = vmatprep.mubr.f32.mxu0 0.0
        %1074 = vmatmul.mubr.f32.gmra.mrb[0].mxu0 %v930
        %v1075 = vpop.f32.mrb[0].mxu0
        %v1076 = vadd.f32 %v884, %v1075
        %v1077 = vpop.f32.mrb[0].mxu0
        %1078 = vmatprep.mubr.f32.mxu0 0.0
        %1079 = vmatmul.mubr.f32.gmra.mrb[0].mxu0 %v933
        %v1080 = vpop.f32.mrb[0].mxu0
        %v1081 = vadd.f32 %v884, %v1080
        %v1082 = vpop.f32.mrb[0].mxu0
        %1083 = vdwg.mxu0
        %v1084 = vmax.f32 %v1006, 0.0
        %v1085 = vmax.f32 %v1011, 0.0
        %v1086 = vmax.f32 %v1016, 0.0
        %v1087 = vmax.f32 %v1021, 0.0
        %v1088 = vmax.f32 %v1026, 0.0
        %v1089 = vmax.f32 %v1031, 0.0
        %v1090 = vmax.f32 %v1036, 0.0
        %v1091 = vmax.f32 %v1041, 0.0
        %v1092 = vmax.f32 %v1046, 0.0
        %v1093 = vmax.f32 %v1051, 0.0
        %v1094 = vmax.f32 %v1056, 0.0
        %v1095 = vmax.f32 %v1061, 0.0
        %v1096 = vmax.f32 %v1066, 0.0
        %v1097 = vmax.f32 %v1071, 0.0
        %v1098 = vmax.f32 %v1076, 0.0
        %v1099 = vmax.f32 %v1081, 0.0
        %v1100 = vrot.slane %v1084, 1
        %v1101 = vrot.slane %v1085, 1
        %v1102 = vrot.slane %v1086, 1
        %v1103 = vrot.slane %v1087, 1
        %v1104 = vrot.slane %v1088, 1
        %v1105 = vrot.slane %v1089, 1
        %v1106 = vrot.slane %v1090, 1
        %v1107 = vrot.slane %v1091, 1
        %v1108 = vrot.slane %v1092, 1
        %v1109 = vrot.slane %v1093, 1
        %v1110 = vrot.slane %v1094, 1
        %v1111 = vrot.slane %v1095, 1
        %v1112 = vrot.slane %v1096, 1
        %v1113 = vrot.slane %v1097, 1
        %v1114 = vrot.slane %v1098, 1
        %v1115 = vrot.slane %v1099, 1
        %v1116 = vsel %vm682, %v1114, %v1115
        %v1117 = vsel %vm682, %v1113, %v1114
        %v1118 = vsel %vm682, %v1112, %v1113
        %v1119 = vsel %vm682, %v1111, %v1112
        %v1120 = vsel %vm682, %v1110, %v1111
        %v1121 = vsel %vm682, %v1109, %v1110
        %v1122 = vsel %vm682, %v1108, %v1109
        %v1123 = vsel %vm682, %v1107, %v1108
        %v1124 = vsel %vm682, %v1106, %v1107
        %v1125 = vsel %vm682, %v1105, %v1106
        %v1126 = vsel %vm682, %v1104, %v1105
        %v1127 = vsel %vm682, %v1103, %v1104
        %v1128 = vsel %vm682, %v1102, %v1103
        %v1129 = vsel %vm682, %v1101, %v1102
        %v1130 = vsel %vm682, %v1100, %v1101
        %v1131 = vsel %vm682, %v1115, %v1100
        %v1132 = vmax.f32 %v1084, %v1130
        %v1133 = vmax.f32 %v1085, %v1129
        %v1134 = vmax.f32 %v1086, %v1128
        %v1135 = vmax.f32 %v1087, %v1127
        %v1136 = vmax.f32 %v1088, %v1126
        %v1137 = vmax.f32 %v1089, %v1125
        %v1138 = vmax.f32 %v1090, %v1124
        %v1139 = vmax.f32 %v1091, %v1123
        %v1140 = vmax.f32 %v1092, %v1122
        %v1141 = vmax.f32 %v1093, %v1121
        %v1142 = vmax.f32 %v1094, %v1120
        %v1143 = vmax.f32 %v1095, %v1119
        %v1144 = vmax.f32 %v1096, %v1118
        %v1145 = vmax.f32 %v1097, %v1117
        %v1146 = vmax.f32 %v1098, %v1116
        %v1147 = vmax.f32 %v1099, %v1131
        %vm1148 = vcmask 261120
        %1149 = vst.msk [vmem:[#allocation2] sm:$0xff] %vm1148, %v1132
        %1150 = vst.msk [vmem:[#allocation2 + $0x8] sm:$0xff] %vm1148, %v1133
        %1151 = vst.msk [vmem:[#allocation2 + $0x10] sm:$0xff] %vm1148, %v1134
        %1152 = vst.msk [vmem:[#allocation2 + $0x18] sm:$0xff] %vm1148, %v1135
        %1153 = vst.msk [vmem:[#allocation2 + $0x20] sm:$0xff] %vm1148, %v1136
        %1154 = vst.msk [vmem:[#allocation2 + $0x28] sm:$0xff] %vm1148, %v1137
        %1155 = vst.msk [vmem:[#allocation2 + $0x30] sm:$0xff] %vm1148, %v1138
        %1156 = vst.msk [vmem:[#allocation2 + $0x38] sm:$0xff] %vm1148, %v1139
        %1157 = vst.msk [vmem:[#allocation2 + $0x40] sm:$0xff] %vm1148, %v1140
        %1158 = vst.msk [vmem:[#allocation2 + $0x48] sm:$0xff] %vm1148, %v1141
        %1159 = vst.msk [vmem:[#allocation2 + $0x50] sm:$0xff] %vm1148, %v1142
        %1160 = vst.msk [vmem:[#allocation2 + $0x58] sm:$0xff] %vm1148, %v1143
        %1161 = vst.msk [vmem:[#allocation2 + $0x60] sm:$0xff] %vm1148, %v1144
        %1162 = vst.msk [vmem:[#allocation2 + $0x68] sm:$0xff] %vm1148, %v1145
        %1163 = vst.msk [vmem:[#allocation2 + $0x70] sm:$0xff] %vm1148, %v1146
        %1164 = vst.msk [vmem:[#allocation2 + $0x78] sm:$0xff] %vm1148, %v1147
        %v1165 = vld [vmem:[#allocation2] ss:$2 sm:$0xff]
        %s1166 = scalar_lea.vmem [#allocation2], 16
        %v1167 = vld [vmem:[%s1166] ss:$2 sm:$0xff]
        %s1168 = scalar_lea.vmem [#allocation2], 32
        %v1169 = vld [vmem:[%s1168] ss:$2 sm:$0xff]
        %s1170 = scalar_lea.vmem [#allocation2], 48
        %v1171 = vld [vmem:[%s1170] ss:$2 sm:$0xff]
        %s1172 = scalar_lea.vmem [#allocation2], 64
        %v1173 = vld [vmem:[%s1172] ss:$2 sm:$0xff]
        %s1174 = scalar_lea.vmem [#allocation2], 80
        %v1175 = vld [vmem:[%s1174] ss:$2 sm:$0xff]
        %s1176 = scalar_lea.vmem [#allocation2], 96
        %v1177 = vld [vmem:[%s1176] ss:$2 sm:$0xff]
        %s1178 = scalar_lea.vmem [#allocation2], 112
        %v1179 = vld [vmem:[%s1178] ss:$2 sm:$0xff]
        %vm1180 = vcmp.lt.s32.totalorder %v377, 0
        %v1181 = vsub.s32 0, %v377
        %v1182 = vsel %vm1180, %v1181, %v377
        %v1183 = vshrl.u32 %v1182, 3
        %v1184 = vand.u32 %v1182, 7
        %v1185 = vsub.s32 0, %v1184
        %v1186 = vsel %vm1180, %v1185, %v1184
        %vm1187 = vcmp.lt.s32.totalorder %v378, 0
        %v1188 = vsub.s32 0, %v378
        %v1189 = vsel %vm1187, %v1188, %v378
        %v1190 = vshrl.u32 %v1189, 3
        %v1191 = vand.u32 %v1189, 7
        %v1192 = vsub.s32 0, %v1191
        %v1193 = vsel %vm1187, %v1192, %v1191
        %vm1194 = vcmp.lt.s32.totalorder %v379, 0
        %v1195 = vsub.s32 0, %v379
        %v1196 = vsel %vm1194, %v1195, %v379
        %v1197 = vshrl.u32 %v1196, 3
        %v1198 = vand.u32 %v1196, 7
        %v1199 = vsub.s32 0, %v1198
        %v1200 = vsel %vm1194, %v1199, %v1198
        %vm1201 = vcmp.lt.s32.totalorder %v380, 0
        %v1202 = vsub.s32 0, %v380
        %v1203 = vsel %vm1201, %v1202, %v380
        %v1204 = vshrl.u32 %v1203, 3
        %v1205 = vand.u32 %v1203, 7
        %v1206 = vsub.s32 0, %v1205
        %v1207 = vsel %vm1201, %v1206, %v1205
        %vm1208 = vcmp.lt.s32.totalorder %v381, 0
        %v1209 = vsub.s32 0, %v381
        %v1210 = vsel %vm1208, %v1209, %v381
        %v1211 = vshrl.u32 %v1210, 3
        %v1212 = vand.u32 %v1210, 7
        %v1213 = vsub.s32 0, %v1212
        %v1214 = vsel %vm1208, %v1213, %v1212
        %vm1215 = vcmp.lt.s32.totalorder %v382, 0
        %v1216 = vsub.s32 0, %v382
        %v1217 = vsel %vm1215, %v1216, %v382
        %v1218 = vshrl.u32 %v1217, 3
        %v1219 = vand.u32 %v1217, 7
        %v1220 = vsub.s32 0, %v1219
        %v1221 = vsel %vm1215, %v1220, %v1219
        %vm1222 = vcmp.lt.s32.totalorder %v383, 0
        %v1223 = vsub.s32 0, %v383
        %v1224 = vsel %vm1222, %v1223, %v383
        %v1225 = vshrl.u32 %v1224, 3
        %v1226 = vand.u32 %v1224, 7
        %v1227 = vsub.s32 0, %v1226
        %v1228 = vsel %vm1222, %v1227, %v1226
        %vm1229 = vcmp.lt.s32.totalorder %v384, 0
        %v1230 = vsub.s32 0, %v384
        %v1231 = vsel %vm1229, %v1230, %v384
        %v1232 = vshrl.u32 %v1231, 3
        %v1233 = vand.u32 %v1231, 7
        %v1234 = vsub.s32 0, %v1233
        %v1235 = vsel %vm1229, %v1234, %v1233
        %vm1236 = vcmp.ne.s32.totalorder %v1186, 0
        %vm1237 = vcmp.ne.s32.totalorder %v1193, 0
        %vm1238 = vcmp.ne.s32.totalorder %v1200, 0
        %vm1239 = vcmp.ne.s32.totalorder %v1207, 0
        %vm1240 = vcmp.ne.s32.totalorder %v1214, 0
        %vm1241 = vcmp.ne.s32.totalorder %v1221, 0
        %vm1242 = vcmp.ne.s32.totalorder %v1228, 0
        %vm1243 = vcmp.ne.s32.totalorder %v1235, 0
        %vm1244 = vcmp.lt.s32.totalorder %v1186, 0
        %vm1245 = vcmp.lt.s32.totalorder %v1193, 0
        %vm1246 = vcmp.lt.s32.totalorder %v1200, 0
        %vm1247 = vcmp.lt.s32.totalorder %v1207, 0
        %vm1248 = vcmp.lt.s32.totalorder %v1214, 0
        %vm1249 = vcmp.lt.s32.totalorder %v1221, 0
        %vm1250 = vcmp.lt.s32.totalorder %v1228, 0
        %vm1251 = vcmp.lt.s32.totalorder %v1235, 0
        %vm1252 = vmand %vm1244, %vm1236
        %vm1253 = vmand %vm1245, %vm1237
        %vm1254 = vmand %vm1246, %vm1238
        %vm1255 = vmand %vm1247, %vm1239
        %vm1256 = vmand %vm1248, %vm1240
        %vm1257 = vmand %vm1249, %vm1241
        %vm1258 = vmand %vm1250, %vm1242
        %vm1259 = vmand %vm1251, %vm1243
        %v1260 = vadd.s32 %v1186, 8
        %v1261 = vadd.s32 %v1193, 8
        %v1262 = vadd.s32 %v1200, 8
        %v1263 = vadd.s32 %v1207, 8
        %v1264 = vadd.s32 %v1214, 8
        %v1265 = vadd.s32 %v1221, 8
        %v1266 = vadd.s32 %v1228, 8
        %v1267 = vadd.s32 %v1235, 8
        %v1268 = vsel %vm1252, %v1260, %v1186
        %v1269 = vsel %vm1253, %v1261, %v1193
        %v1270 = vsel %vm1254, %v1262, %v1200
        %v1271 = vsel %vm1255, %v1263, %v1207
        %v1272 = vsel %vm1256, %v1264, %v1214
        %v1273 = vsel %vm1257, %v1265, %v1221
        %v1274 = vsel %vm1258, %v1266, %v1228
        %v1275 = vsel %vm1259, %v1267, %v1235
        %vm1276 = vcmp.eq.s32.totalorder %v1268, 0
        %vm1277 = vcmp.eq.s32.totalorder %v1269, 0
        %vm1278 = vcmp.eq.s32.totalorder %v1270, 0
        %vm1279 = vcmp.eq.s32.totalorder %v1271, 0
        %vm1280 = vcmp.eq.s32.totalorder %v1272, 0
        %vm1281 = vcmp.eq.s32.totalorder %v1273, 0
        %vm1282 = vcmp.eq.s32.totalorder %v1274, 0
        %vm1283 = vcmp.eq.s32.totalorder %v1275, 0
        %v1284 = vrot.slane %v1165, 7
        %v1285 = vrot.slane %v1167, 7
        %v1286 = vrot.slane %v1169, 7
        %v1287 = vrot.slane %v1171, 7
        %v1288 = vrot.slane %v1173, 7
        %v1289 = vrot.slane %v1175, 7
        %v1290 = vrot.slane %v1177, 7
        %v1291 = vrot.slane %v1179, 7
        %v1292 = vsel %vm617, %v1290, %v1291
        %v1293 = vsel %vm617, %v1289, %v1290
        %v1294 = vsel %vm617, %v1288, %v1289
        %v1295 = vsel %vm617, %v1287, %v1288
        %v1296 = vsel %vm617, %v1286, %v1287
        %v1297 = vsel %vm617, %v1285, %v1286
        %v1298 = vsel %vm617, %v1284, %v1285
        %v1299 = vsel %vm617, %v1291, %v1284
        %v1300 = vsel %vm1276, 0.0, %v1299
        %v1301 = vsel %vm1277, 0.0, %v1298
        %v1302 = vsel %vm1278, 0.0, %v1297
        %v1303 = vsel %vm1279, 0.0, %v1296
        %v1304 = vsel %vm1280, 0.0, %v1295
        %v1305 = vsel %vm1281, 0.0, %v1294
        %v1306 = vsel %vm1282, 0.0, %v1293
        %v1307 = vsel %vm1283, 0.0, %v1292
        %vm1308 = vcmp.eq.s32.totalorder %v1268, 7
        %vm1309 = vcmp.eq.s32.totalorder %v1269, 7
        %vm1310 = vcmp.eq.s32.totalorder %v1270, 7
        %vm1311 = vcmp.eq.s32.totalorder %v1271, 7
        %vm1312 = vcmp.eq.s32.totalorder %v1272, 7
        %vm1313 = vcmp.eq.s32.totalorder %v1273, 7
        %vm1314 = vcmp.eq.s32.totalorder %v1274, 7
        %vm1315 = vcmp.eq.s32.totalorder %v1275, 7
        %v1316 = vrot.slane %v1165, 1
        %v1317 = vrot.slane %v1167, 1
        %v1318 = vrot.slane %v1169, 1
        %v1319 = vrot.slane %v1171, 1
        %v1320 = vrot.slane %v1173, 1
        %v1321 = vrot.slane %v1175, 1
        %v1322 = vrot.slane %v1177, 1
        %v1323 = vrot.slane %v1179, 1
        %v1324 = vsel %vm682, %v1322, %v1323
        %v1325 = vsel %vm682, %v1321, %v1322
        %v1326 = vsel %vm682, %v1320, %v1321
        %v1327 = vsel %vm682, %v1319, %v1320
        %v1328 = vsel %vm682, %v1318, %v1319
        %v1329 = vsel %vm682, %v1317, %v1318
        %v1330 = vsel %vm682, %v1316, %v1317
        %v1331 = vsel %vm682, %v1323, %v1316
        %v1332 = vsel %vm1308, 0.0, %v1330
        %v1333 = vsel %vm1309, 0.0, %v1329
        %v1334 = vsel %vm1310, 0.0, %v1328
        %v1335 = vsel %vm1311, 0.0, %v1327
        %v1336 = vsel %vm1312, 0.0, %v1326
        %v1337 = vsel %vm1313, 0.0, %v1325
        %v1338 = vsel %vm1314, 0.0, %v1324
        %v1339 = vsel %vm1315, 0.0, %v1331
        %1348 = vrot.lane.b32.xlu0 %v1165, 32
        %v1349 = vpop.permute.xlu0 %1348
        %1350 = vrot.lane.b32.xlu0 %v1167, 32
        %v1351 = vpop.permute.xlu0 %1350
        %1352 = vrot.lane.b32.xlu0 %v1169, 32
        %v1353 = vpop.permute.xlu0 %1352
        %1354 = vrot.lane.b32.xlu0 %v1171, 32
        %v1355 = vpop.permute.xlu0 %1354
        %1356 = vrot.lane.b32.xlu0 %v1173, 32
        %v1357 = vpop.permute.xlu0 %1356
        %1358 = vrot.lane.b32.xlu0 %v1175, 32
        %v1359 = vpop.permute.xlu0 %1358
        %1360 = vrot.lane.b32.xlu0 %v1177, 32
        %v1361 = vpop.permute.xlu0 %1360
        %1362 = vrot.lane.b32.xlu0 %v1179, 32
        %v1363 = vpop.permute.xlu0 %1362
        %1380 = vrot.lane.b32.xlu0 %v1332, 64
        %v1381 = vpop.permute.xlu0 %1380
        %1382 = vrot.lane.b32.xlu0 %v1333, 64
        %v1383 = vpop.permute.xlu0 %1382
        %1384 = vrot.lane.b32.xlu0 %v1334, 64
        %v1385 = vpop.permute.xlu0 %1384
        %1386 = vrot.lane.b32.xlu0 %v1335, 64
        %v1387 = vpop.permute.xlu0 %1386
        %1388 = vrot.lane.b32.xlu0 %v1336, 64
        %v1389 = vpop.permute.xlu0 %1388
        %1390 = vrot.lane.b32.xlu0 %v1337, 64
        %v1391 = vpop.permute.xlu0 %1390
        %1392 = vrot.lane.b32.xlu0 %v1338, 64
        %v1393 = vpop.permute.xlu0 %1392
        %1394 = vrot.lane.b32.xlu0 %v1339, 64
        %v1395 = vpop.permute.xlu0 %1394
        %v1404 = vsel %vm1148, %v1300, %v1349
        %v1405 = vsel %vm1148, %v1301, %v1351
        %v1406 = vsel %vm1148, %v1302, %v1353
        %v1407 = vsel %vm1148, %v1303, %v1355
        %v1408 = vsel %vm1148, %v1304, %v1357
        %v1409 = vsel %vm1148, %v1305, %v1359
        %v1410 = vsel %vm1148, %v1306, %v1361
        %v1411 = vsel %vm1148, %v1307, %v1363
        %vm1412 = vcmask 523264
        %v1413 = vsel %vm1412, %v1404, %v1381
        %v1414 = vsel %vm1412, %v1405, %v1383
        %v1415 = vsel %vm1412, %v1406, %v1385
        %v1416 = vsel %vm1412, %v1407, %v1387
        %v1417 = vsel %vm1412, %v1408, %v1389
        %v1418 = vsel %vm1412, %v1409, %v1391
        %v1419 = vsel %vm1412, %v1410, %v1393
        %v1420 = vsel %vm1412, %v1411, %v1395
        %v1421 = vld [vmem:[%s4] sm:$0xff]
        %v1422 = vld [vmem:[%s4 + $0x8] sm:$0xff]
        %v1423 = vld [vmem:[%s4 + $0x10] sm:$0xff]
        %v1424 = vld [vmem:[%s4 + $0x18] sm:$0xff]
        %v1425 = vld [vmem:[%s4 + $0x20] sm:$0xff]
        %v1426 = vld [vmem:[%s4 + $0x28] sm:$0xff]
        %v1427 = vld [vmem:[%s4 + $0x30] sm:$0xff]
        %v1428 = vld [vmem:[%s4 + $0x38] sm:$0xff]
        %v1429 = vld [vmem:[%s4 + $0x40] sm:$0xff]
        %v1430 = vld [vmem:[%s4 + $0x48] sm:$0xff]
        %v1431 = vld [vmem:[%s4 + $0x50] sm:$0xff]
        %v1432 = vld [vmem:[%s4 + $0x58] sm:$0xff]
        %v1433 = vld [vmem:[%s5] sm:$0x1]
        %v1435 = vlaneseq
        %v1436 = vshrl.u32 %v1435, 7
        %v1437 = vsub.s32 0, %v1436
        %v1438 = vrot.slane %v1433, %v1437
        %vm1440 = vcmask 785408
        %v1442 = vsel %vm1440, %v1413, 0
        %v1445 = vsel %vm1440, %v1414, 0
        %v1448 = vsel %vm1440, %v1415, 0
        %v1451 = vsel %vm1440, %v1416, 0
        %v1454 = vsel %vm1440, %v1417, 0
        %v1457 = vsel %vm1440, %v1418, 0
        %v1460 = vsel %vm1440, %v1419, 0
        %v1463 = vsel %vm1440, %v1420, 0
        %1465 = vmatprep.subr.mxu0 0.0
        %1466 = vmatpush1.msra.mxu0 %v1421
        %1467 = vmatprep.subr.mxu0 0.0
        %1468 = vmatpush1.msra.mxu0 %v1422
        %1469 = vmatprep.subr.mxu0 0.0
        %1470 = vmatpush1.msra.mxu0 %v1423
        %1471 = vmatprep.subr.mxu0 0.0
        %1472 = vmatpush1.msra.mxu0 %v1424
        %1473 = vmatprep.subr.mxu0 0.0
        %1474 = vmatpush1.msra.mxu0 %v1425
        %1475 = vmatprep.subr.mxu0 0.0
        %1476 = vmatpush1.msra.mxu0 %v1426
        %1477 = vmatprep.subr.mxu0 0.0
        %1478 = vmatpush1.msra.mxu0 %v1427
        %1479 = vmatprep.subr.mxu0 0.0
        %1480 = vmatpush1.msra.mxu0 %v1428
        %1481 = vmatprep.subr.mxu0 0.0
        %1482 = vmatpush1.msra.mxu0 %v1429
        %1483 = vmatprep.subr.mxu0 0.0
        %1484 = vmatpush1.msra.mxu0 %v1430
        %1485 = vmatprep.subr.mxu0 0.0
        %1486 = vmatpush1.msra.mxu0 %v1431
        %1487 = vmatprep.subr.mxu0 0.0
        %1488 = vmatpush1.msra.mxu0 %v1432
        %1489 = vmatprep.subr.mxu0 0.0
        %1490 = vmatpush1.msra.mxu0 0.0
        %1491 = vmatprep.subr.mxu0 0.0
        %1492 = vmatpush1.msra.mxu0 0.0
        %1493 = vmatprep.subr.mxu0 0.0
        %1494 = vmatpush1.msra.mxu0 0.0
        %1495 = vmatprep.subr.mxu0 0.0
        %1496 = vmatpush1.msra.mxu0 0.0
        %1497 = vmatprep.subr.mxu0 0.0
        %1498 = vmatpush1.msra.mxu0 0.0
        %1499 = vmatprep.subr.mxu0 0.0
        %1500 = vmatpush1.msra.mxu0 0.0
        %1501 = vmatprep.subr.mxu0 0.0
        %1502 = vmatpush1.msra.mxu0 0.0
        %1503 = vmatprep.subr.mxu0 0.0
        %1504 = vmatpush1.msra.mxu0 0.0
        %1505 = vmatprep.subr.mxu0 0.0
        %1506 = vmatpush1.msra.mxu0 0.0
        %1507 = vmatprep.subr.mxu0 0.0
        %1508 = vmatpush1.msra.mxu0 0.0
        %1509 = vmatprep.subr.mxu0 0.0
        %1510 = vmatpush1.msra.mxu0 0.0
        %1511 = vmatprep.subr.mxu0 0.0
        %1512 = vmatpush1.msra.mxu0 0.0
        %1513 = vmatprep.subr.mxu0 0.0
        %1514 = vmatpush1.msra.mxu0 0.0
        %1515 = vmatprep.subr.mxu0 0.0
        %1516 = vmatpush1.msra.mxu0 0.0
        %1517 = vmatprep.subr.mxu0 0.0
        %1518 = vmatpush1.msra.mxu0 0.0
        %1519 = vmatprep.subr.mxu0 0.0
        %1520 = vmatpush1.msra.mxu0 0.0
        %1521 = vmatprep.subr.mxu0 0.0
        %1522 = vmatpush1.msra.mxu0 0.0
        %1523 = vmatprep.subr.mxu0 0.0
        %1524 = vmatpush1.msra.mxu0 0.0
        %1525 = vmatprep.subr.mxu0 0.0
        %1526 = vmatpush1.msra.mxu0 0.0
        %1527 = vmatprep.subr.mxu0 0.0
        %1528 = vmatpush1.msra.mxu0 0.0
        %1529 = vmatprep.mubr.f32.mxu0 0.0
        %1530 = vmatmul.mubr.f32.gmra.mrb[0].mxu0 %v1442
        %v1531 = vpop.f32.mrb[0].mxu0
        %v1532 = vadd.f32 %v1438, %v1531
        %v1533 = vpop.f32.mrb[0].mxu0
        %1534 = vmatprep.mubr.f32.mxu0 0.0
        %1535 = vmatmul.mubr.f32.gmra.mrb[0].mxu0 %v1445
        %v1536 = vpop.f32.mrb[0].mxu0
        %v1537 = vadd.f32 %v1438, %v1536
        %v1538 = vpop.f32.mrb[0].mxu0
        %1539 = vmatprep.mubr.f32.mxu0 0.0
        %1540 = vmatmul.mubr.f32.gmra.mrb[0].mxu0 %v1448
        %v1541 = vpop.f32.mrb[0].mxu0
        %v1542 = vadd.f32 %v1438, %v1541
        %v1543 = vpop.f32.mrb[0].mxu0
        %1544 = vmatprep.mubr.f32.mxu0 0.0
        %1545 = vmatmul.mubr.f32.gmra.mrb[0].mxu0 %v1451
        %v1546 = vpop.f32.mrb[0].mxu0
        %v1547 = vadd.f32 %v1438, %v1546
        %v1548 = vpop.f32.mrb[0].mxu0
        %1549 = vmatprep.mubr.f32.mxu0 0.0
        %1550 = vmatmul.mubr.f32.gmra.mrb[0].mxu0 %v1454
        %v1551 = vpop.f32.mrb[0].mxu0
        %v1552 = vadd.f32 %v1438, %v1551
        %v1553 = vpop.f32.mrb[0].mxu0
        %1554 = vmatprep.mubr.f32.mxu0 0.0
        %1555 = vmatmul.mubr.f32.gmra.mrb[0].mxu0 %v1457
        %v1556 = vpop.f32.mrb[0].mxu0
        %v1557 = vadd.f32 %v1438, %v1556
        %v1558 = vpop.f32.mrb[0].mxu0
        %1559 = vmatprep.mubr.f32.mxu0 0.0
        %1560 = vmatmul.mubr.f32.gmra.mrb[0].mxu0 %v1460
        %v1561 = vpop.f32.mrb[0].mxu0
        %v1562 = vadd.f32 %v1438, %v1561
        %v1563 = vpop.f32.mrb[0].mxu0
        %1564 = vmatprep.mubr.f32.mxu0 0.0
        %1565 = vmatmul.mubr.f32.gmra.mrb[0].mxu0 %v1463
        %v1566 = vpop.f32.mrb[0].mxu0
        %v1567 = vadd.f32 %v1438, %v1566
        %v1568 = vpop.f32.mrb[0].mxu0
        %1569 = vdwg.mxu0
        %v1570 = vmax.f32 %v1532, 0.0
        %v1571 = vmax.f32 %v1537, 0.0
        %v1572 = vmax.f32 %v1542, 0.0
        %v1573 = vmax.f32 %v1547, 0.0
        %v1574 = vmax.f32 %v1552, 0.0
        %v1575 = vmax.f32 %v1557, 0.0
        %v1576 = vmax.f32 %v1562, 0.0
        %v1577 = vmax.f32 %v1567, 0.0
        %v1578 = vrot.slane %v1570, 1
        %v1579 = vrot.slane %v1571, 1
        %v1580 = vrot.slane %v1572, 1
        %v1581 = vrot.slane %v1573, 1
        %v1582 = vrot.slane %v1574, 1
        %v1583 = vrot.slane %v1575, 1
        %v1584 = vrot.slane %v1576, 1
        %v1585 = vrot.slane %v1577, 1
        %v1586 = vsel %vm682, %v1584, %v1585
        %v1587 = vsel %vm682, %v1583, %v1584
        %v1588 = vsel %vm682, %v1582, %v1583
        %v1589 = vsel %vm682, %v1581, %v1582
        %v1590 = vsel %vm682, %v1580, %v1581
        %v1591 = vsel %vm682, %v1579, %v1580
        %v1592 = vsel %vm682, %v1578, %v1579
        %v1593 = vsel %vm682, %v1585, %v1578
        %v1594 = vmax.f32 %v1570, %v1592
        %v1595 = vmax.f32 %v1571, %v1591
        %v1596 = vmax.f32 %v1572, %v1590
        %v1597 = vmax.f32 %v1573, %v1589
        %v1598 = vmax.f32 %v1574, %v1588
        %v1599 = vmax.f32 %v1575, %v1587
        %v1600 = vmax.f32 %v1576, %v1586
        %v1601 = vmax.f32 %v1577, %v1593
        %1602 = vst.msk [vmem:[#allocation3] sm:$0xff] %vm1148, %v1594
        %1603 = vst.msk [vmem:[#allocation3 + $0x8] sm:$0xff] %vm1148, %v1595
        %1604 = vst.msk [vmem:[#allocation3 + $0x10] sm:$0xff] %vm1148, %v1596
        %1605 = vst.msk [vmem:[#allocation3 + $0x18] sm:$0xff] %vm1148, %v1597
        %1606 = vst.msk [vmem:[#allocation3 + $0x20] sm:$0xff] %vm1148, %v1598
        %1607 = vst.msk [vmem:[#allocation3 + $0x28] sm:$0xff] %vm1148, %v1599
        %1608 = vst.msk [vmem:[#allocation3 + $0x30] sm:$0xff] %vm1148, %v1600
        %1609 = vst.msk [vmem:[#allocation3 + $0x38] sm:$0xff] %vm1148, %v1601
        %v1610 = vld [vmem:[#allocation3] ss:$2 sm:$0xff]
        %s1611 = scalar_lea.vmem [#allocation3], 16
        %v1612 = vld [vmem:[%s1611] ss:$2 sm:$0xff]
        %s1613 = scalar_lea.vmem [#allocation3], 32
        %v1614 = vld [vmem:[%s1613] ss:$2 sm:$0xff]
        %s1615 = scalar_lea.vmem [#allocation3], 48
        %v1616 = vld [vmem:[%s1615] ss:$2 sm:$0xff]
        %vm1617 = vcmp.lt.s32.totalorder %v377, 0
        %v1618 = vsub.s32 0, %v377
        %v1619 = vsel %vm1617, %v1618, %v377
        %v1620 = vshrl.u32 %v1619, 2
        %v1621 = vand.u32 %v1619, 3
        %v1622 = vsub.s32 0, %v1621
        %v1623 = vsel %vm1617, %v1622, %v1621
        %vm1624 = vcmp.lt.s32.totalorder %v378, 0
        %v1625 = vsub.s32 0, %v378
        %v1626 = vsel %vm1624, %v1625, %v378
        %v1627 = vshrl.u32 %v1626, 2
        %v1628 = vand.u32 %v1626, 3
        %v1629 = vsub.s32 0, %v1628
        %v1630 = vsel %vm1624, %v1629, %v1628
        %vm1631 = vcmp.lt.s32.totalorder %v379, 0
        %v1632 = vsub.s32 0, %v379
        %v1633 = vsel %vm1631, %v1632, %v379
        %v1634 = vshrl.u32 %v1633, 2
        %v1635 = vand.u32 %v1633, 3
        %v1636 = vsub.s32 0, %v1635
        %v1637 = vsel %vm1631, %v1636, %v1635
        %vm1638 = vcmp.lt.s32.totalorder %v380, 0
        %v1639 = vsub.s32 0, %v380
        %v1640 = vsel %vm1638, %v1639, %v380
        %v1641 = vshrl.u32 %v1640, 2
        %v1642 = vand.u32 %v1640, 3
        %v1643 = vsub.s32 0, %v1642
        %v1644 = vsel %vm1638, %v1643, %v1642
        %vm1645 = vcmp.ne.s32.totalorder %v1623, 0
        %vm1646 = vcmp.ne.s32.totalorder %v1630, 0
        %vm1647 = vcmp.ne.s32.totalorder %v1637, 0
        %vm1648 = vcmp.ne.s32.totalorder %v1644, 0
        %vm1649 = vcmp.lt.s32.totalorder %v1623, 0
        %vm1650 = vcmp.lt.s32.totalorder %v1630, 0
        %vm1651 = vcmp.lt.s32.totalorder %v1637, 0
        %vm1652 = vcmp.lt.s32.totalorder %v1644, 0
        %vm1653 = vmand %vm1649, %vm1645
        %vm1654 = vmand %vm1650, %vm1646
        %vm1655 = vmand %vm1651, %vm1647
        %vm1656 = vmand %vm1652, %vm1648
        %v1657 = vadd.s32 %v1623, 4
        %v1658 = vadd.s32 %v1630, 4
        %v1659 = vadd.s32 %v1637, 4
        %v1660 = vadd.s32 %v1644, 4
        %v1661 = vsel %vm1653, %v1657, %v1623
        %v1662 = vsel %vm1654, %v1658, %v1630
        %v1663 = vsel %vm1655, %v1659, %v1637
        %v1664 = vsel %vm1656, %v1660, %v1644
        %vm1665 = vcmp.eq.s32.totalorder %v1661, 0
        %vm1666 = vcmp.eq.s32.totalorder %v1662, 0
        %vm1667 = vcmp.eq.s32.totalorder %v1663, 0
        %vm1668 = vcmp.eq.s32.totalorder %v1664, 0
        %v1669 = vrot.slane %v1610, 7
        %v1670 = vrot.slane %v1612, 7
        %v1671 = vrot.slane %v1614, 7
        %v1672 = vrot.slane %v1616, 7
        %v1673 = vsel %vm617, %v1671, %v1672
        %v1674 = vsel %vm617, %v1670, %v1671
        %v1675 = vsel %vm617, %v1669, %v1670
        %v1676 = vsel %vm617, %v1672, %v1669
        %v1677 = vsel %vm1665, 0.0, %v1676
        %v1678 = vsel %vm1666, 0.0, %v1675
        %v1679 = vsel %vm1667, 0.0, %v1674
        %v1680 = vsel %vm1668, 0.0, %v1673
        %vm1681 = vcmp.eq.s32.totalorder %v1661, 3
        %vm1682 = vcmp.eq.s32.totalorder %v1662, 3
        %vm1683 = vcmp.eq.s32.totalorder %v1663, 3
        %vm1684 = vcmp.eq.s32.totalorder %v1664, 3
        %v1685 = vrot.slane %v1610, 1
        %v1686 = vrot.slane %v1612, 1
        %v1687 = vrot.slane %v1614, 1
        %v1688 = vrot.slane %v1616, 1
        %v1689 = vsel %vm682, %v1687, %v1688
        %v1690 = vsel %vm682, %v1686, %v1687
        %v1691 = vsel %vm682, %v1685, %v1686
        %v1692 = vsel %vm682, %v1688, %v1685
        %v1693 = vsel %vm1681, 0.0, %v1691
        %v1694 = vsel %vm1682, 0.0, %v1690
        %v1695 = vsel %vm1683, 0.0, %v1689
        %v1696 = vsel %vm1684, 0.0, %v1692
        %1701 = vrot.lane.b32.xlu0 %v1610, 32
        %v1702 = vpop.permute.xlu0 %1701
        %1703 = vrot.lane.b32.xlu0 %v1612, 32
        %v1704 = vpop.permute.xlu0 %1703
        %1705 = vrot.lane.b32.xlu0 %v1614, 32
        %v1706 = vpop.permute.xlu0 %1705
        %1707 = vrot.lane.b32.xlu0 %v1616, 32
        %v1708 = vpop.permute.xlu0 %1707
        %1717 = vrot.lane.b32.xlu0 %v1693, 64
        %v1718 = vpop.permute.xlu0 %1717
        %1719 = vrot.lane.b32.xlu0 %v1694, 64
        %v1720 = vpop.permute.xlu0 %1719
        %1721 = vrot.lane.b32.xlu0 %v1695, 64
        %v1722 = vpop.permute.xlu0 %1721
        %1723 = vrot.lane.b32.xlu0 %v1696, 64
        %v1724 = vpop.permute.xlu0 %1723
        %v1729 = vsel %vm1148, %v1677, %v1702
        %v1730 = vsel %vm1148, %v1678, %v1704
        %v1731 = vsel %vm1148, %v1679, %v1706
        %v1732 = vsel %vm1148, %v1680, %v1708
        %v1733 = vsel %vm1412, %v1729, %v1718
        %v1734 = vsel %vm1412, %v1730, %v1720
        %v1735 = vsel %vm1412, %v1731, %v1722
        %v1736 = vsel %vm1412, %v1732, %v1724
        %v1737 = vld [vmem:[%s6] sm:$0xff]
        %v1738 = vld [vmem:[%s6 + $0x8] sm:$0xff]
        %v1739 = vld [vmem:[%s6 + $0x10] sm:$0xff]
        %v1740 = vld [vmem:[%s6 + $0x18] sm:$0xff]
        %v1741 = vld [vmem:[%s6 + $0x20] sm:$0xff]
        %v1742 = vld [vmem:[%s6 + $0x28] sm:$0xff]
        %v1743 = vld [vmem:[%s6 + $0x30] sm:$0xff]
        %v1744 = vld [vmem:[%s6 + $0x38] sm:$0xff]
        %v1745 = vld [vmem:[%s6 + $0x40] sm:$0xff]
        %v1746 = vld [vmem:[%s6 + $0x48] sm:$0xff]
        %v1747 = vld [vmem:[%s6 + $0x50] sm:$0xff]
        %v1748 = vld [vmem:[%s6 + $0x58] sm:$0xff]
        %v1749 = vld [vmem:[%s7] sm:$0x1]
        %v1751 = vlaneseq
        %v1752 = vshrl.u32 %v1751, 7
        %v1753 = vsub.s32 0, %v1752
        %v1754 = vrot.slane %v1749, %v1753
        %v1757 = vsel %vm1440, %v1733, 0
        %v1760 = vsel %vm1440, %v1734, 0
        %v1763 = vsel %vm1440, %v1735, 0
        %v1766 = vsel %vm1440, %v1736, 0
        %1768 = vmatprep.subr.mxu0 0.0
        %1769 = vmatpush1.msra.mxu0 %v1737
        %1770 = vmatprep.subr.mxu0 0.0
        %1771 = vmatpush1.msra.mxu0 %v1738
        %1772 = vmatprep.subr.mxu0 0.0
        %1773 = vmatpush1.msra.mxu0 %v1739
        %1774 = vmatprep.subr.mxu0 0.0
        %1775 = vmatpush1.msra.mxu0 %v1740
        %1776 = vmatprep.subr.mxu0 0.0
        %1777 = vmatpush1.msra.mxu0 %v1741
        %1778 = vmatprep.subr.mxu0 0.0
        %1779 = vmatpush1.msra.mxu0 %v1742
        %1780 = vmatprep.subr.mxu0 0.0
        %1781 = vmatpush1.msra.mxu0 %v1743
        %1782 = vmatprep.subr.mxu0 0.0
        %1783 = vmatpush1.msra.mxu0 %v1744
        %1784 = vmatprep.subr.mxu0 0.0
        %1785 = vmatpush1.msra.mxu0 %v1745
        %1786 = vmatprep.subr.mxu0 0.0
        %1787 = vmatpush1.msra.mxu0 %v1746
        %1788 = vmatprep.subr.mxu0 0.0
        %1789 = vmatpush1.msra.mxu0 %v1747
        %1790 = vmatprep.subr.mxu0 0.0
        %1791 = vmatpush1.msra.mxu0 %v1748
        %1792 = vmatprep.subr.mxu0 0.0
        %1793 = vmatpush1.msra.mxu0 0.0
        %1794 = vmatprep.subr.mxu0 0.0
        %1795 = vmatpush1.msra.mxu0 0.0
        %1796 = vmatprep.subr.mxu0 0.0
        %1797 = vmatpush1.msra.mxu0 0.0
        %1798 = vmatprep.subr.mxu0 0.0
        %1799 = vmatpush1.msra.mxu0 0.0
        %1800 = vmatprep.subr.mxu0 0.0
        %1801 = vmatpush1.msra.mxu0 0.0
        %1802 = vmatprep.subr.mxu0 0.0
        %1803 = vmatpush1.msra.mxu0 0.0
        %1804 = vmatprep.subr.mxu0 0.0
        %1805 = vmatpush1.msra.mxu0 0.0
        %1806 = vmatprep.subr.mxu0 0.0
        %1807 = vmatpush1.msra.mxu0 0.0
        %1808 = vmatprep.subr.mxu0 0.0
        %1809 = vmatpush1.msra.mxu0 0.0
        %1810 = vmatprep.subr.mxu0 0.0
        %1811 = vmatpush1.msra.mxu0 0.0
        %1812 = vmatprep.subr.mxu0 0.0
        %1813 = vmatpush1.msra.mxu0 0.0
        %1814 = vmatprep.subr.mxu0 0.0
        %1815 = vmatpush1.msra.mxu0 0.0
        %1816 = vmatprep.subr.mxu0 0.0
        %1817 = vmatpush1.msra.mxu0 0.0
        %1818 = vmatprep.subr.mxu0 0.0
        %1819 = vmatpush1.msra.mxu0 0.0
        %1820 = vmatprep.subr.mxu0 0.0
        %1821 = vmatpush1.msra.mxu0 0.0
        %1822 = vmatprep.subr.mxu0 0.0
        %1823 = vmatpush1.msra.mxu0 0.0
        %1824 = vmatprep.subr.mxu0 0.0
        %1825 = vmatpush1.msra.mxu0 0.0
        %1826 = vmatprep.subr.mxu0 0.0
        %1827 = vmatpush1.msra.mxu0 0.0
        %1828 = vmatprep.subr.mxu0 0.0
        %1829 = vmatpush1.msra.mxu0 0.0
        %1830 = vmatprep.subr.mxu0 0.0
        %1831 = vmatpush1.msra.mxu0 0.0
        %1832 = vmatprep.mubr.f32.mxu0 0.0
        %1833 = vmatmul.mubr.f32.gmra.mrb[0].mxu0 %v1757
        %v1834 = vpop.f32.mrb[0].mxu0
        %v1835 = vadd.f32 %v1754, %v1834
        %v1836 = vpop.f32.mrb[0].mxu0
        %1837 = vmatprep.mubr.f32.mxu0 0.0
        %1838 = vmatmul.mubr.f32.gmra.mrb[0].mxu0 %v1760
        %v1839 = vpop.f32.mrb[0].mxu0
        %v1840 = vadd.f32 %v1754, %v1839
        %v1841 = vpop.f32.mrb[0].mxu0
        %1842 = vmatprep.mubr.f32.mxu0 0.0
        %1843 = vmatmul.mubr.f32.gmra.mrb[0].mxu0 %v1763
        %v1844 = vpop.f32.mrb[0].mxu0
        %v1845 = vadd.f32 %v1754, %v1844
        %v1846 = vpop.f32.mrb[0].mxu0
        %1847 = vmatprep.mubr.f32.mxu0 0.0
        %1848 = vmatmul.mubr.f32.gmra.mrb[0].mxu0 %v1766
        %v1849 = vpop.f32.mrb[0].mxu0
        %v1850 = vadd.f32 %v1754, %v1849
        %v1851 = vpop.f32.mrb[0].mxu0
        %1852 = vdwg.mxu0
        %v1853 = vmax.f32 %v1835, 0.0
        %v1854 = vmax.f32 %v1840, 0.0
        %v1855 = vmax.f32 %v1845, 0.0
        %v1856 = vmax.f32 %v1850, 0.0
        %v1857 = vrot.slane %v1853, 1
        %v1858 = vrot.slane %v1854, 1
        %v1859 = vrot.slane %v1855, 1
        %v1860 = vrot.slane %v1856, 1
        %v1861 = vsel %vm682, %v1859, %v1860
        %v1862 = vsel %vm682, %v1858, %v1859
        %v1863 = vsel %vm682, %v1857, %v1858
        %v1864 = vsel %vm682, %v1860, %v1857
        %v1865 = vmax.f32 %v1853, %v1863
        %v1866 = vmax.f32 %v1854, %v1862
        %v1867 = vmax.f32 %v1855, %v1861
        %v1868 = vmax.f32 %v1856, %v1864
        %1869 = vst.msk [vmem:[#allocation4] sm:$0xff] %vm1412, %v1865
        %1870 = vst.msk [vmem:[#allocation4 + $0x8] sm:$0xff] %vm1412, %v1866
        %1871 = vst.msk [vmem:[#allocation4 + $0x10] sm:$0xff] %vm1412, %v1867
        %1872 = vst.msk [vmem:[#allocation4 + $0x18] sm:$0xff] %vm1412, %v1868
        %v1873 = vld [vmem:[#allocation4] ss:$2 sm:$0xff]
        %s1874 = scalar_lea.vmem [#allocation4], 16
        %v1875 = vld [vmem:[%s1874] ss:$2 sm:$0xff]
        %v1876 = vld [vmem:[%s1] sm:$0xff]
        %vm1877 = vcmask 130048
        %v1879 = vsel %vm1877, %v1876, 0
        %1881 = vmatprep.subr.mxu0 0.0
        %1882 = vmatpush1.msra.mxu0 %v1873
        %1883 = vmatprep.subr.mxu0 0.0
        %1884 = vmatpush1.msra.mxu0 %v1875
        %1885 = vmatprep.subr.mxu0 0.0
        %1886 = vmatpush1.msra.mxu0 0.0
        %1887 = vmatprep.subr.mxu0 0.0
        %1888 = vmatpush1.msra.mxu0 0.0
        %1889 = vmatprep.subr.mxu0 0.0
        %1890 = vmatpush1.msra.mxu0 0.0
        %1891 = vmatprep.subr.mxu0 0.0
        %1892 = vmatpush1.msra.mxu0 0.0
        %1893 = vmatprep.subr.mxu0 0.0
        %1894 = vmatpush1.msra.mxu0 0.0
        %1895 = vmatprep.subr.mxu0 0.0
        %1896 = vmatpush1.msra.mxu0 0.0
        %1897 = vmatprep.subr.mxu0 0.0
        %1898 = vmatpush1.msra.mxu0 0.0
        %1899 = vmatprep.subr.mxu0 0.0
        %1900 = vmatpush1.msra.mxu0 0.0
        %1901 = vmatprep.subr.mxu0 0.0
        %1902 = vmatpush1.msra.mxu0 0.0
        %1903 = vmatprep.subr.mxu0 0.0
        %1904 = vmatpush1.msra.mxu0 0.0
        %1905 = vmatprep.subr.mxu0 0.0
        %1906 = vmatpush1.msra.mxu0 0.0
        %1907 = vmatprep.subr.mxu0 0.0
        %1908 = vmatpush1.msra.mxu0 0.0
        %1909 = vmatprep.subr.mxu0 0.0
        %1910 = vmatpush1.msra.mxu0 0.0
        %1911 = vmatprep.subr.mxu0 0.0
        %1912 = vmatpush1.msra.mxu0 0.0
        %1913 = vmatprep.subr.mxu0 0.0
        %1914 = vmatpush1.msra.mxu0 0.0
        %1915 = vmatprep.subr.mxu0 0.0
        %1916 = vmatpush1.msra.mxu0 0.0
        %1917 = vmatprep.subr.mxu0 0.0
        %1918 = vmatpush1.msra.mxu0 0.0
        %1919 = vmatprep.subr.mxu0 0.0
        %1920 = vmatpush1.msra.mxu0 0.0
        %1921 = vmatprep.subr.mxu0 0.0
        %1922 = vmatpush1.msra.mxu0 0.0
        %1923 = vmatprep.subr.mxu0 0.0
        %1924 = vmatpush1.msra.mxu0 0.0
        %1925 = vmatprep.subr.mxu0 0.0
        %1926 = vmatpush1.msra.mxu0 0.0
        %1927 = vmatprep.subr.mxu0 0.0
        %1928 = vmatpush1.msra.mxu0 0.0
        %1929 = vmatprep.subr.mxu0 0.0
        %1930 = vmatpush1.msra.mxu0 0.0
        %1931 = vmatprep.subr.mxu0 0.0
        %1932 = vmatpush1.msra.mxu0 0.0
        %1933 = vmatprep.subr.mxu0 0.0
        %1934 = vmatpush1.msra.mxu0 0.0
        %1935 = vmatprep.subr.mxu0 0.0
        %1936 = vmatpush1.msra.mxu0 0.0
        %1937 = vmatprep.subr.mxu0 0.0
        %1938 = vmatpush1.msra.mxu0 0.0
        %1939 = vmatprep.subr.mxu0 0.0
        %1940 = vmatpush1.msra.mxu0 0.0
        %1941 = vmatprep.subr.mxu0 0.0
        %1942 = vmatpush1.msra.mxu0 0.0
        %1943 = vmatprep.subr.mxu0 0.0
        %1944 = vmatpush1.msra.mxu0 0.0
        %1945 = vmatprep.mubr.f32.mxu0 0.0
        %1946 = vmatmul.mubr.f32.gmra.mrb[0].mxu0 %v1879
        %v1947 = vpop.f32.mrb[0].mxu0
        %v1948 = vadd.f32 0.0, %v1947
        %v1949 = vpop.f32.mrb[0].mxu0
        %1950 = vdwg.mxu0
        %v1951 = vld [vmem:[%s8] sm:$0xff]
        %v1952 = vld [vmem:[%s8 + $0x8] sm:$0xff]
        %v1953 = vld [vmem:[%s8 + $0x10] sm:$0xff]
        %v1954 = vld [vmem:[%s8 + $0x18] sm:$0xff]
        %v1955 = vld [vmem:[%s8 + $0x20] sm:$0xff]
        %v1956 = vld [vmem:[%s8 + $0x28] sm:$0xff]
        %v1957 = vld [vmem:[%s8 + $0x30] sm:$0xff]
        %v1958 = vld [vmem:[%s8 + $0x38] sm:$0xff]
        %v1959 = vld [vmem:[%s9] sm:$0x1]
        %v1961 = vlaneseq
        %v1962 = vshrl.u32 %v1961, 7
        %v1963 = vsub.s32 0, %v1962
        %v1964 = vrot.slane %v1959, %v1963
        %v1967 = vsel %vm1412, %v1948, 0
        %1969 = vmatprep.subr.mxu0 0.0
        %1970 = vmatpush1.msra.mxu0 %v1951
        %1971 = vmatprep.subr.mxu0 0.0
        %1972 = vmatpush1.msra.mxu0 %v1952
        %1973 = vmatprep.subr.mxu0 0.0
        %1974 = vmatpush1.msra.mxu0 %v1953
        %1975 = vmatprep.subr.mxu0 0.0
        %1976 = vmatpush1.msra.mxu0 %v1954
        %1977 = vmatprep.subr.mxu0 0.0
        %1978 = vmatpush1.msra.mxu0 %v1955
        %1979 = vmatprep.subr.mxu0 0.0
        %1980 = vmatpush1.msra.mxu0 %v1956
        %1981 = vmatprep.subr.mxu0 0.0
        %1982 = vmatpush1.msra.mxu0 %v1957
        %1983 = vmatprep.subr.mxu0 0.0
        %1984 = vmatpush1.msra.mxu0 %v1958
        %1985 = vmatprep.subr.mxu0 0.0
        %1986 = vmatpush1.msra.mxu0 0.0
        %1987 = vmatprep.subr.mxu0 0.0
        %1988 = vmatpush1.msra.mxu0 0.0
        %1989 = vmatprep.subr.mxu0 0.0
        %1990 = vmatpush1.msra.mxu0 0.0
        %1991 = vmatprep.subr.mxu0 0.0
        %1992 = vmatpush1.msra.mxu0 0.0
        %1993 = vmatprep.subr.mxu0 0.0
        %1994 = vmatpush1.msra.mxu0 0.0
        %1995 = vmatprep.subr.mxu0 0.0
        %1996 = vmatpush1.msra.mxu0 0.0
        %1997 = vmatprep.subr.mxu0 0.0
        %1998 = vmatpush1.msra.mxu0 0.0
        %1999 = vmatprep.subr.mxu0 0.0
        %2000 = vmatpush1.msra.mxu0 0.0
        %2001 = vmatprep.subr.mxu0 0.0
        %2002 = vmatpush1.msra.mxu0 0.0
        %2003 = vmatprep.subr.mxu0 0.0
        %2004 = vmatpush1.msra.mxu0 0.0
        %2005 = vmatprep.subr.mxu0 0.0
        %2006 = vmatpush1.msra.mxu0 0.0
        %2007 = vmatprep.subr.mxu0 0.0
        %2008 = vmatpush1.msra.mxu0 0.0
        %2009 = vmatprep.subr.mxu0 0.0
        %2010 = vmatpush1.msra.mxu0 0.0
        %2011 = vmatprep.subr.mxu0 0.0
        %2012 = vmatpush1.msra.mxu0 0.0
        %2013 = vmatprep.subr.mxu0 0.0
        %2014 = vmatpush1.msra.mxu0 0.0
        %2015 = vmatprep.subr.mxu0 0.0
        %2016 = vmatpush1.msra.mxu0 0.0
        %2017 = vmatprep.subr.mxu0 0.0
        %2018 = vmatpush1.msra.mxu0 0.0
        %2019 = vmatprep.subr.mxu0 0.0
        %2020 = vmatpush1.msra.mxu0 0.0
        %2021 = vmatprep.subr.mxu0 0.0
        %2022 = vmatpush1.msra.mxu0 0.0
        %2023 = vmatprep.subr.mxu0 0.0
        %2024 = vmatpush1.msra.mxu0 0.0
        %2025 = vmatprep.subr.mxu0 0.0
        %2026 = vmatpush1.msra.mxu0 0.0
        %2027 = vmatprep.subr.mxu0 0.0
        %2028 = vmatpush1.msra.mxu0 0.0
        %2029 = vmatprep.subr.mxu0 0.0
        %2030 = vmatpush1.msra.mxu0 0.0
        %2031 = vmatprep.subr.mxu0 0.0
        %2032 = vmatpush1.msra.mxu0 0.0
        %2033 = vmatprep.mubr.f32.mxu0 0.0
        %2034 = vmatmul.mubr.f32.gmra.mrb[0].mxu0 %v1967
        %v2035 = vpop.f32.mrb[0].mxu0
        %v2036 = vadd.f32 %v1964, %v2035
        %v2037 = vpop.f32.mrb[0].mxu0
        %2038 = vdwg.mxu0
        %v2039 = vmax.f32 %v2036, 0.0
        %v2040 = vmul.f32 %v2039, %v2039
        %v2041 = vsel %vm1148, %v2040, 0.0
        %2042 = vadd.xlane.f32.xlu0 %v2041
        %v2043 = vpop.xlane.xlu0 %2042
        %v2044 = vmax.f32 %v2043, 1e-24
        %v2045 = vrsqrt.pop %v2044
        %v2046 = vmul.f32 %v2039, %v2045
        %2047 = vst.msk [vmem:[%s353] sm:$0xff] %vm1148, %v2046
        %s2048 = sand.u32 %s247, 1
        %s2049 = scalar_lea.sflag [#allocation6], %s2048
        %s2050 = sand.u32 %s247, 1
        %s2051 = smul.addr %s2050, 8
        %s2052 = scalar_lea.vmem [#allocation5], %s2051
        // Predicated region
        $region61: #{cnn1d_attention_forward.1} parent=59 // pred_check
          %p2053 = pneg %p257
        $region62: #{cnn1d_attention_forward.1} parent=59 // pred_check_branch
          %2055 = sbr.rel (%p2053) target = $region64
        $region63: #{cnn1d_attention_forward.1} parent=59 // pred_region
          %s2057 = ssub.s32 128, 128
          %2058 = vsyncadd %s2049, %s2057
          %s2059 = smul.addr %s24, 128
          %s2060 = scalar_lea.hbm %s10, %s2059
          %s2062 = sshll.u32 %s2052, 4
          %s2063 = int_to_ptr.vmem [resolvable:$true] %s2062
          %2065 = dma.vmem_to_hbm [thread:$0]  %s2063, 128, %s2060, %s2049
        $region64: #{cnn1d_attention_forward.1} parent=59 // pred_fallthru
          _
      $region60: #{cnn1d_attention_forward.1} parent=5 // pred_fallthru
        _
      %p2066 = scmp.le.s32.totalorder 2, %s19
      // Predicated region
      $region65: #{cnn1d_attention_forward.1} parent=5 // pred_check
        %p2067 = pneg %p2066
      $region66: #{cnn1d_attention_forward.1} parent=5 // pred_check_branch
        %2069 = sbr.rel (%p2067) target = $region68
      $region67: #{cnn1d_attention_forward.1} parent=5 // pred_region
        %s2070 = ssub.s32 %s19, 2
        // Predicated region
        $region69: #{cnn1d_attention_forward.1} parent=67 // pred_check
          %p2071 = pneg %p263
        $region70: #{cnn1d_attention_forward.1} parent=67 // pred_check_branch
          %2073 = sbr.rel (%p2071) target = $region72
        $region71: #{cnn1d_attention_forward.1} parent=67 // pred_region
          %s2074 = sand.u32 %s248, 1
          %s2075 = scalar_lea.sflag [#allocation6], %s2074
          %s2076 = sand.u32 %s248, 1
          %s2077 = smul.addr %s2076, 8
          %s2078 = scalar_lea.vmem [#allocation5], %s2077
          %2079 = dma.done %s2075, 128
        $region72: #{cnn1d_attention_forward.1} parent=67 // pred_fallthru
          _
      $region68: #{cnn1d_attention_forward.1} parent=5 // pred_fallthru
        _
    $region6: #{cnn1d_attention_forward.1} parent=1 // loop_footer
      %s23 = sadd.s32 1, %s19
    $region7: #{cnn1d_attention_forward.1} parent=1 // loop_footer_branch
      %18 = sbr.rel target = $region3
    $region8: #{cnn1d_attention_forward.1} parent=1 // loop_exit
      _
    %2080 = vsyncpa [#allocation6], 1
    %s2081 = scalar_lea.sflag [#allocation6], 1
    %2082 = vsyncpa %s2081, 1

</llo_original>
